<compile_context>
chip_gen: v7x
topology: tpu7x:2x2x1
jax: 0.10.0
libtpu: 0.0.40
codegen_flags: <defaults>
</compile_context>

<pallas_src>
import functools
import math

import jax
import jax.numpy as jnp
from jax import lax
from jax.experimental import pallas as pl
from jax.experimental.pallas import tpu as pltpu


# ------------------------------ Pallas kernel -------------------------------

def _layer_norm(x, gamma, beta, eps):
    mean = jnp.mean(x, axis=-1, keepdims=True)
    var = jnp.mean(jnp.square(x - mean), axis=-1, keepdims=True)
    return (x - mean) * lax.rsqrt(var + eps) * gamma + beta


def _bert_attention_kernel(*refs, num_heads, head_dim, seq_len, q_tile,
                           has_mask, eps):
    if has_mask:
        (x_ref, mask_ref, wq_ref, bq_ref, wkv_ref, bkv_ref, wo_ref, bo_ref,
         gamma_ref, beta_ref, o_ref, k_scr, v_scr) = refs
    else:
        (x_ref, wq_ref, bq_ref, wkv_ref, bkv_ref, wo_ref, bo_ref,
         gamma_ref, beta_ref, o_ref, k_scr, v_scr) = refs
        mask_ref = None

    H = num_heads * head_dim
    S = seq_len

    # ---- K/V projection + heads relayout: ONCE per batch element -----------
    @pl.when(pl.program_id(1) == 0)
    def _():
        xs = x_ref[0].astype(jnp.bfloat16)                        # (S, H)
        kv = jnp.dot(xs, wkv_ref[...],
                     preferred_element_type=jnp.float32) + bkv_ref[...]  # (S, 2H)
        kv = kv.astype(jnp.bfloat16)
        k = kv[:, :H].reshape(S, num_heads, head_dim)
        v = kv[:, H:].reshape(S, num_heads, head_dim)
        k_scr[...] = jnp.transpose(k, (1, 0, 2))                  # (nh, S, dh)
        v_scr[...] = jnp.transpose(v, (1, 0, 2))                  # (nh, S, dh)

    # ---- Q projection for this query tile only ------------------------------
    if q_tile == seq_len:
        x_q = x_ref[0]                                            # (TQ, H) fp32
    else:
        row0 = pl.multiple_of(pl.program_id(1) * q_tile, q_tile)
        x_q = x_ref[0, pl.ds(row0, q_tile), :]                    # (TQ, H) fp32
    # 1/sqrt(head_dim) is pre-folded into wq / bq.
    q = jnp.dot(x_q.astype(jnp.bfloat16), wq_ref[...],
                preferred_element_type=jnp.float32) + bq_ref[...]  # (TQ, H)
    q3 = jnp.transpose(
        q.astype(jnp.bfloat16).reshape(q_tile, num_heads, head_dim), (1, 0, 2))

    # ---- attention core (batched over heads, fp32 accumulation) -------------
    scores = jnp.einsum("nqd,nkd->nqk", q3, k_scr[...],
                        preferred_element_type=jnp.float32)       # (nh, TQ, S)
    if has_mask:
        scores = scores + mask_ref[...].astype(jnp.float32)       # (1, TQ, S)
    scores = scores - jnp.max(scores, axis=-1, keepdims=True)
    p = jnp.exp(scores)
    denom = jnp.sum(p, axis=-1, keepdims=True)    # >= 1 for any finite mask
    # Attention-probs dropout is an inference-mode identity.
    probs = p * pl.reciprocal(denom, approx=True)
    ctx = jnp.einsum("nqk,nkd->nqd", probs.astype(jnp.bfloat16), v_scr[...],
                     preferred_element_type=jnp.float32)          # (nh, TQ, dh)

    # ---- merge heads, output projection, residual, LayerNorm ----------------
    ctx_m = jnp.transpose(ctx, (1, 0, 2)).reshape(q_tile, H).astype(jnp.bfloat16)
    attn = jnp.dot(ctx_m, wo_ref[...],
                   preferred_element_type=jnp.float32) + bo_ref[...]   # (TQ, H)
    # BertSelfOutput: dropout(identity) + residual + LayerNorm, all fp32.
    out = _layer_norm(attn + x_q, gamma_ref[...], beta_ref[...], eps)
    o_ref[0] = out.astype(o_ref.dtype)


def _pick_q_tile(S):
    if S <= 512:
        return S
    for t in (512, 256, 128, 64):
        if S % t == 0:
            return t
    return S


def _pick_vmem_limit():
    # ~48 MiB on v7x (64 MiB physical VMEM), ~96 MiB on v5e/v6e (128 MiB).
    try:
        phys = int(pltpu.get_tpu_info().vmem_capacity_bytes)
    except Exception:
        phys = 64 * 1024 * 1024
    return int(min(phys * 3 // 4, 110 * 1024 * 1024))


def bert_attention(x, mask, packed, *, num_heads, eps):
    """x: (B, S, H) fp32.  mask: None or (B, S, S) additive fp32 bias."""
    B, S, H = x.shape
    head_dim = H // num_heads
    q_tile = _pick_q_tile(S)
    assert S % q_tile == 0
    num_q_tiles = S // q_tile
    has_mask = mask is not None

    kernel = functools.partial(
        _bert_attention_kernel, num_heads=num_heads, head_dim=head_dim,
        seq_len=S, q_tile=q_tile, has_mask=has_mask, eps=eps)

    def _const(shape):
        nd = len(shape)
        # Constant index map -> single-buffer the weight (one VMEM copy).
        return pl.BlockSpec(shape, lambda b, q, _nd=nd: (0,) * _nd,
                            pipeline_mode=pl.Buffered(1))

    # x: full sequence, block index changes only with the batch axis;
    # single-buffered so VMEM holds exactly one (S, H) fp32 copy.
    in_specs = [pl.BlockSpec((1, S, H), lambda b, q: (b, 0, 0),
                             pipeline_mode=pl.Buffered(1))]
    args = [x]
    if has_mask:
        in_specs.append(pl.BlockSpec((1, q_tile, S), lambda b, q: (b, q, 0)))
        args.append(mask.astype(jnp.bfloat16))    # additive bias: bf16 DMA
    in_specs += [
        _const((H, H)),          # wq   (bf16, 1/sqrt(dh) folded in)
        _const((1, H)),          # bq   (fp32, 1/sqrt(dh) folded in)
        _const((H, 2 * H)),      # wkv  (bf16)
        _const((1, 2 * H)),      # bkv  (fp32)
        _const((H, H)),          # wo   (bf16)
        _const((1, H)),          # bo   (fp32)
        _const((1, H)),          # gamma
        _const((1, H)),          # beta
    ]
    args += [packed["wq"], packed["bq"], packed["wkv"], packed["bkv"],
             packed["wo"], packed["bo"], packed["gamma"], packed["beta"]]

    return pl.pallas_call(
        kernel,
        out_shape=jax.ShapeDtypeStruct((B, S, H), x.dtype),
        grid=(B, num_q_tiles),
        in_specs=in_specs,
        out_specs=pl.BlockSpec((1, q_tile, H), lambda b, q: (b, q, 0)),
        scratch_shapes=[
            pltpu.VMEM((num_heads, S, head_dim), jnp.bfloat16),   # K (per batch)
            pltpu.VMEM((num_heads, S, head_dim), jnp.bfloat16),   # V (per batch)
        ],
        compiler_params=pltpu.CompilerParams(
            # q axis is "arbitrary": the per-batch K/V carry in scratch
            # requires sequential q-tile iteration within a batch element.
            dimension_semantics=("parallel", "arbitrary"),
            vmem_limit_bytes=_pick_vmem_limit()),
    )(*args)


# ------------------------- parameter packing / init -------------------------

def init_params(key, H):
    keys = jax.random.split(key, 8)
    s = 0.02

    def w(k, shape):
        return (s * jax.random.normal(k, shape)).astype(jnp.float32)

    return {
        "wq": w(keys[0], (H, H)), "bq": w(keys[1], (1, H)),
        "wk": w(keys[2], (H, H)), "bk": w(keys[3], (1, H)),
        "wv": w(keys[4], (H, H)), "bv": w(keys[5], (1, H)),
        "wo": w(keys[6], (H, H)), "bo": w(keys[7], (1, H)),
        "g": jnp.ones((1, H), jnp.float32), "b": jnp.zeros((1, H), jnp.float32),
    }


def pack_params(p, num_heads):
    """Weights stored pre-transposed as (in, out); 1/sqrt(dh) folded into Q."""
    H = p["wq"].shape[0]
    scale = 1.0 / math.sqrt(float(H // num_heads))
    return {
        "wq": (p["wq"] * scale).astype(jnp.bfloat16),
        "bq": (p["bq"] * scale).astype(jnp.float32),
        "wkv": jnp.concatenate([p["wk"], p["wv"]], axis=1).astype(jnp.bfloat16),
        "bkv": jnp.concatenate([p["bk"], p["bv"]], axis=1).astype(jnp.float32),
        "wo": p["wo"].astype(jnp.bfloat16),
        "bo": p["bo"].astype(jnp.float32),
        "gamma": p["g"], "beta": p["b"],
    }


# ----------------------------- pure-JAX reference ----------------------------

def bert_attention_ref(x, mask, p, num_heads, eps):
    B, S, H = x.shape
    dh = H // num_heads

    def split(t):
        return t.reshape(B, S, num_heads, dh).transpose(0, 2, 1, 3)

    q = split(x @ p["wq"] + p["bq"][0])
    k = split(x @ p["wk"] + p["bk"][0])
    v = split(x @ p["wv"] + p["bv"][0])
    scores = jnp.einsum("bhqd,bhkd->bhqk", q, k) / jnp.sqrt(jnp.float32(dh))
    if mask is not None:
        scores = scores + mask[:, None, :, :]
    probs = jax.nn.softmax(scores, axis=-1)
    ctx = jnp.einsum("bhqk,bhkd->bhqd", probs, v).transpose(0, 2, 1, 3).reshape(B, S, H)
    attn = ctx @ p["wo"] + p["bo"][0]
    y = attn + x
    m = jnp.mean(y, axis=-1, keepdims=True)
    var = jnp.mean((y - m) ** 2, axis=-1, keepdims=True)
    return (y - m) / jnp.sqrt(var + eps) * p["g"][0] + p["b"][0]


# -------------------------------- test driver --------------------------------

if __name__ == "__main__":
    B, S, H = 2, 16, 128
    num_heads = 4
    eps = 1e-12

    key = jax.random.PRNGKey(0)
    k_x, k_m, k_p = jax.random.split(key, 3)

    x = jax.random.normal(k_x, (B, S, H), dtype=jnp.float32)
    params = init_params(k_p, H)
    packed = pack_params(params, num_heads)

    # attention_mask=None path.
    out_none = jax.block_until_ready(
        bert_attention(x, None, packed, num_heads=num_heads, eps=eps))
    ref_none = bert_attention_ref(x, None, params, num_heads, eps)

    # Additive attention-mask path (e.g. padding bias).
    mask = (-8.0 * (jax.random.uniform(k_m, (B, S, S)) < 0.3)).astype(jnp.float32)
    out_mask = jax.block_until_ready(
        bert_attention(x, mask, packed, num_heads=num_heads, eps=eps))
    ref_mask = bert_attention_ref(x, mask, params, num_heads, eps)

    assert out_none.shape == (B, S, H) and out_mask.shape == (B, S, H)
    # bf16 matmuls + approx reciprocal -> loosened tolerance vs fp32 reference.
    assert jnp.allclose(out_none, ref_none, atol=2e-2, rtol=2e-2), (
        f"no-mask max abs diff {jnp.max(jnp.abs(out_none - ref_none))}")
    assert jnp.allclose(out_mask, ref_mask, atol=2e-2, rtol=2e-2), (
        f"mask max abs diff {jnp.max(jnp.abs(out_mask - ref_mask))}")

    print("KERNEL_OK")
</pallas_src>

<mosaic_0001>
module attributes {stable_mosaic.version = 11 : i64} {
  func.func @_bert_attention_kernel(%arg0: i32, %arg1: i32, %arg2: memref<1x16x128xf32, #tpu.memory_space<vmem>>, %arg3: memref<128x128xbf16, #tpu.memory_space<vmem>>, %arg4: memref<1x128xf32, #tpu.memory_space<vmem>>, %arg5: memref<128x256xbf16, #tpu.memory_space<vmem>>, %arg6: memref<1x256xf32, #tpu.memory_space<vmem>>, %arg7: memref<128x128xbf16, #tpu.memory_space<vmem>>, %arg8: memref<1x128xf32, #tpu.memory_space<vmem>>, %arg9: memref<1x128xf32, #tpu.memory_space<vmem>>, %arg10: memref<1x128xf32, #tpu.memory_space<vmem>>, %arg11: memref<1x16x128xf32, #tpu.memory_space<vmem>>, %arg12: memref<4x16x32xbf16, #tpu.memory_space<vmem>>, %arg13: memref<4x16x32xbf16, #tpu.memory_space<vmem>>) attributes {dimension_semantics = [#tpu.dimension_semantics<parallel>, #tpu.dimension_semantics<arbitrary>], iteration_bounds = array<i64: 2, 1>, scalar_prefetch = 0 : i64, scratch_operands = 2 : i64, tpu.core_type = #tpu.core_type<tc>, window_params = [{pipeline_mode = #tpu.pipeline_mode<synchronous>, transform_indices = @transform_0, window_bounds = array<i64: 1, 16, 128>}, {pipeline_mode = #tpu.pipeline_mode<synchronous>, transform_indices = @transform_1, window_bounds = array<i64: 128, 128>}, {pipeline_mode = #tpu.pipeline_mode<synchronous>, transform_indices = @transform_2, window_bounds = array<i64: 1, 128>}, {pipeline_mode = #tpu.pipeline_mode<synchronous>, transform_indices = @transform_3, window_bounds = array<i64: 128, 256>}, {pipeline_mode = #tpu.pipeline_mode<synchronous>, transform_indices = @transform_4, window_bounds = array<i64: 1, 256>}, {pipeline_mode = #tpu.pipeline_mode<synchronous>, transform_indices = @transform_5, window_bounds = array<i64: 128, 128>}, {pipeline_mode = #tpu.pipeline_mode<synchronous>, transform_indices = @transform_6, window_bounds = array<i64: 1, 128>}, {pipeline_mode = #tpu.pipeline_mode<synchronous>, transform_indices = @transform_7, window_bounds = array<i64: 1, 128>}, {pipeline_mode = #tpu.pipeline_mode<synchronous>, transform_indices = @transform_8, window_bounds = array<i64: 1, 128>}, {transform_indices = @transform_9, window_bounds = array<i64: 1, 16, 128>}]} {
    %c0_i32 = arith.constant 0 : i32
    %0 = arith.cmpi eq, %arg1, %c0_i32 : i32
    %1 = arith.extui %0 : i1 to i32
    %c0_i32_0 = arith.constant 0 : i32
    %2 = arith.cmpi ne, %1, %c0_i32_0 : i32
    scf.if %2 {
      %c0_34 = arith.constant 0 : index
      %c0_35 = arith.constant 0 : index
      %c0_36 = arith.constant 0 : index
      %65 = vector.load %arg2[%c0_34, %c0_35, %c0_36] : memref<1x16x128xf32, #tpu.memory_space<vmem>>, vector<1x16x128xf32>
      %66 = vector.shape_cast %65 : vector<1x16x128xf32> to vector<16x128xf32>
      %67 = arith.truncf %66 : vector<16x128xf32> to vector<16x128xbf16>
      %c0_37 = arith.constant 0 : index
      %c0_38 = arith.constant 0 : index
      %68 = vector.load %arg5[%c0_37, %c0_38] : memref<128x256xbf16, #tpu.memory_space<vmem>>, vector<128x256xbf16>
      %cst_39 = arith.constant dense<0.000000e+00> : vector<16x256xf32>
      %69 = tpu.matmul %67, %68, %cst_39 {dimension_numbers = #tpu.dot_dimension_numbers<[1], [0], [0], [1], [0, 0, 1, 1], [], []>} : vector<16x128xbf16>, vector<128x256xbf16>, vector<16x256xf32> -> vector<16x256xf32>
      %c0_40 = arith.constant 0 : index
      %c0_41 = arith.constant 0 : index
      %70 = vector.load %arg6[%c0_40, %c0_41] : memref<1x256xf32, #tpu.memory_space<vmem>>, vector<1x256xf32>
      %71 = vector.broadcast %70 : vector<1x256xf32> to vector<16x256xf32>
      %72 = arith.addf %69, %71 : vector<16x256xf32>
      %73 = arith.truncf %72 : vector<16x256xf32> to vector<16x256xbf16>
      %74 = vector.extract_strided_slice %73 {offsets = [0, 0], sizes = [16, 128], strides = [1, 1]} : vector<16x256xbf16> to vector<16x128xbf16>
      %75 = vector.shape_cast %74 : vector<16x128xbf16> to vector<16x4x32xbf16>
      %76 = vector.extract_strided_slice %73 {offsets = [0, 128], sizes = [16, 128], strides = [1, 1]} : vector<16x256xbf16> to vector<16x128xbf16>
      %77 = vector.shape_cast %76 : vector<16x128xbf16> to vector<16x4x32xbf16>
      %78 = tpu.transpose %75, [1, 0, 2] : vector<16x4x32xbf16> -> vector<4x16x32xbf16>
      %c0_42 = arith.constant 0 : index
      %c0_43 = arith.constant 0 : index
      %c0_44 = arith.constant 0 : index
      %79 = vector.load %arg12[%c0_42, %c0_43, %c0_44] : memref<4x16x32xbf16, #tpu.memory_space<vmem>>, vector<4x16x32xbf16>
      tpu.vector_store %arg12[%c0_42, %c0_43, %c0_44], %78 {strides = array<i32>} : memref<4x16x32xbf16, #tpu.memory_space<vmem>>, vector<4x16x32xbf16>,
      %80 = tpu.transpose %77, [1, 0, 2] : vector<16x4x32xbf16> -> vector<4x16x32xbf16>
      %c0_45 = arith.constant 0 : index
      %c0_46 = arith.constant 0 : index
      %c0_47 = arith.constant 0 : index
      %81 = vector.load %arg13[%c0_45, %c0_46, %c0_47] : memref<4x16x32xbf16, #tpu.memory_space<vmem>>, vector<4x16x32xbf16>
      tpu.vector_store %arg13[%c0_45, %c0_46, %c0_47], %80 {strides = array<i32>} : memref<4x16x32xbf16, #tpu.memory_space<vmem>>, vector<4x16x32xbf16>,
    } else {
    }
    %c0 = arith.constant 0 : index
    %c0_1 = arith.constant 0 : index
    %c0_2 = arith.constant 0 : index
    %3 = vector.load %arg2[%c0, %c0_1, %c0_2] : memref<1x16x128xf32, #tpu.memory_space<vmem>>, vector<1x16x128xf32>
    %4 = vector.shape_cast %3 : vector<1x16x128xf32> to vector<16x128xf32>
    %5 = arith.truncf %4 : vector<16x128xf32> to vector<16x128xbf16>
    %c0_3 = arith.constant 0 : index
    %c0_4 = arith.constant 0 : index
    %6 = vector.load %arg3[%c0_3, %c0_4] : memref<128x128xbf16, #tpu.memory_space<vmem>>, vector<128x128xbf16>
    %cst = arith.constant dense<0.000000e+00> : vector<16x128xf32>
    %7 = tpu.matmul %5, %6, %cst {dimension_numbers = #tpu.dot_dimension_numbers<[1], [0], [0], [1], [0, 0, 1, 1], [], []>} : vector<16x128xbf16>, vector<128x128xbf16>, vector<16x128xf32> -> vector<16x128xf32>
    %c0_5 = arith.constant 0 : index
    %c0_6 = arith.constant 0 : index
    %8 = vector.load %arg4[%c0_5, %c0_6] : memref<1x128xf32, #tpu.memory_space<vmem>>, vector<1x128xf32>
    %9 = vector.broadcast %8 : vector<1x128xf32> to vector<16x128xf32>
    %10 = arith.addf %7, %9 : vector<16x128xf32>
    %11 = arith.truncf %10 : vector<16x128xf32> to vector<16x128xbf16>
    %12 = vector.shape_cast %11 : vector<16x128xbf16> to vector<16x4x32xbf16>
    %13 = tpu.transpose %12, [1, 0, 2] : vector<16x4x32xbf16> -> vector<4x16x32xbf16>
    %c0_7 = arith.constant 0 : index
    %c0_8 = arith.constant 0 : index
    %c0_9 = arith.constant 0 : index
    %14 = vector.load %arg12[%c0_7, %c0_8, %c0_9] : memref<4x16x32xbf16, #tpu.memory_space<vmem>>, vector<4x16x32xbf16>
    "tpu.trace_start"() <{level = 10 : i32, message = "nqd,nkd->nqk"}> : () -> ()
    %cst_10 = arith.constant dense<0.000000e+00> : vector<4x16x16xf32>
    %15 = tpu.matmul %13, %14, %cst_10 {dimension_numbers = #tpu.dot_dimension_numbers<[2], [2], [1], [1], [0, 0, 0, 1, 1, 1], [0], [0]>} : vector<4x16x32xbf16>, vector<4x16x32xbf16>, vector<4x16x16xf32> -> vector<4x16x16xf32>
    "tpu.trace_stop"() : () -> ()
    %cst_11 = arith.constant dense<0xFF800000> : vector<4x16xf32>
    %16 = vector.multi_reduction <maximumf>, %15, %cst_11 [2] : vector<4x16x16xf32> to vector<4x16xf32>
    %17 = vector.shape_cast %16 : vector<4x16xf32> to vector<4x16x1xf32>
    %18 = vector.broadcast %17 : vector<4x16x1xf32> to vector<4x16x16xf32>
    %19 = arith.subf %15, %18 : vector<4x16x16xf32>
    %20 = math.exp %19 : vector<4x16x16xf32>
    %cst_12 = arith.constant dense<0.000000e+00> : vector<4x16xf32>
    %21 = vector.multi_reduction <add>, %20, %cst_12 [2] : vector<4x16x16xf32> to vector<4x16xf32>
    %22 = vector.shape_cast %21 : vector<4x16xf32> to vector<4x16x1xf32>
    %23 = tpu.reciprocal %22 {approx = true} : vector<4x16x1xf32> -> vector<4x16x1xf32>
    %24 = vector.broadcast %23 : vector<4x16x1xf32> to vector<4x16x16xf32>
    %25 = arith.mulf %20, %24 : vector<4x16x16xf32>
    %26 = arith.truncf %25 : vector<4x16x16xf32> to vector<4x16x16xbf16>
    %c0_13 = arith.constant 0 : index
    %c0_14 = arith.constant 0 : index
    %c0_15 = arith.constant 0 : index
    %27 = vector.load %arg13[%c0_13, %c0_14, %c0_15] : memref<4x16x32xbf16, #tpu.memory_space<vmem>>, vector<4x16x32xbf16>
    "tpu.trace_start"() <{level = 10 : i32, message = "nqk,nkd->nqd"}> : () -> ()
    %cst_16 = arith.constant dense<0.000000e+00> : vector<4x16x32xf32>
    %28 = tpu.matmul %26, %27, %cst_16 {dimension_numbers = #tpu.dot_dimension_numbers<[2], [1], [1], [2], [0, 0, 0, 1, 1, 2], [0], [0]>} : vector<4x16x16xbf16>, vector<4x16x32xbf16>, vector<4x16x32xf32> -> vector<4x16x32xf32>
    "tpu.trace_stop"() : () -> ()
    %29 = tpu.transpose %28, [1, 0, 2] : vector<4x16x32xf32> -> vector<16x4x32xf32>
    %30 = vector.shape_cast %29 : vector<16x4x32xf32> to vector<16x128xf32>
    %31 = arith.truncf %30 : vector<16x128xf32> to vector<16x128xbf16>
    %c0_17 = arith.constant 0 : index
    %c0_18 = arith.constant 0 : index
    %32 = vector.load %arg7[%c0_17, %c0_18] : memref<128x128xbf16, #tpu.memory_space<vmem>>, vector<128x128xbf16>
    %cst_19 = arith.constant dense<0.000000e+00> : vector<16x128xf32>
    %33 = tpu.matmul %31, %32, %cst_19 {dimension_numbers = #tpu.dot_dimension_numbers<[1], [0], [0], [1], [0, 0, 1, 1], [], []>} : vector<16x128xbf16>, vector<128x128xbf16>, vector<16x128xf32> -> vector<16x128xf32>
    %c0_20 = arith.constant 0 : index
    %c0_21 = arith.constant 0 : index
    %34 = vector.load %arg8[%c0_20, %c0_21] : memref<1x128xf32, #tpu.memory_space<vmem>>, vector<1x128xf32>
    %35 = vector.broadcast %34 : vector<1x128xf32> to vector<16x128xf32>
    %36 = arith.addf %33, %35 : vector<16x128xf32>
    %37 = arith.addf %36, %4 : vector<16x128xf32>
    %c0_22 = arith.constant 0 : index
    %c0_23 = arith.constant 0 : index
    %38 = vector.load %arg9[%c0_22, %c0_23] : memref<1x128xf32, #tpu.memory_space<vmem>>, vector<1x128xf32>
    %c0_24 = arith.constant 0 : index
    %c0_25 = arith.constant 0 : index
    %39 = vector.load %arg10[%c0_24, %c0_25] : memref<1x128xf32, #tpu.memory_space<vmem>>, vector<1x128xf32>
    %cst_26 = arith.constant dense<0.000000e+00> : vector<16xf32>
    %40 = vector.multi_reduction <add>, %37, %cst_26 [1] : vector<16x128xf32> to vector<16xf32>
    %41 = vector.shape_cast %40 : vector<16xf32> to vector<16x1xf32>
    %cst_27 = arith.constant 1.280000e+02 : f32
    %42 = vector.broadcast %cst_27 : f32 to vector<16x1xf32>
    %43 = arith.divf %41, %42 : vector<16x1xf32>
    %44 = vector.broadcast %43 : vector<16x1xf32> to vector<16x128xf32>
    %45 = arith.subf %37, %44 : vector<16x128xf32>
    %46 = arith.mulf %45, %45 : vector<16x128xf32>
    %cst_28 = arith.constant dense<0.000000e+00> : vector<16xf32>
    %47 = vector.multi_reduction <add>, %46, %cst_28 [1] : vector<16x128xf32> to vector<16xf32>
    %48 = vector.shape_cast %47 : vector<16xf32> to vector<16x1xf32>
    %cst_29 = arith.constant 1.280000e+02 : f32
    %49 = vector.broadcast %cst_29 : f32 to vector<16x1xf32>
    %50 = arith.divf %48, %49 : vector<16x1xf32>
    %51 = vector.broadcast %43 : vector<16x1xf32> to vector<16x128xf32>
    %52 = arith.subf %37, %51 : vector<16x128xf32>
    %cst_30 = arith.constant 9.99999996E-13 : f32
    %53 = vector.broadcast %cst_30 : f32 to vector<16x1xf32>
    %54 = arith.addf %50, %53 : vector<16x1xf32>
    %55 = math.rsqrt %54 : vector<16x1xf32>
    %56 = vector.broadcast %55 : vector<16x1xf32> to vector<16x128xf32>
    %57 = arith.mulf %52, %56 : vector<16x128xf32>
    %58 = vector.broadcast %38 : vector<1x128xf32> to vector<16x128xf32>
    %59 = arith.mulf %57, %58 : vector<16x128xf32>
    %60 = vector.broadcast %39 : vector<1x128xf32> to vector<16x128xf32>
    %61 = arith.addf %59, %60 : vector<16x128xf32>
    %c0_31 = arith.constant 0 : index
    %c0_32 = arith.constant 0 : index
    %c0_33 = arith.constant 0 : index
    %62 = vector.load %arg11[%c0_31, %c0_32, %c0_33] : memref<1x16x128xf32, #tpu.memory_space<vmem>>, vector<1x16x128xf32>
    %63 = vector.shape_cast %62 : vector<1x16x128xf32> to vector<16x128xf32>
    %64 = vector.shape_cast %61 : vector<16x128xf32> to vector<1x16x128xf32>
    tpu.vector_store %arg11[%c0_31, %c0_32, %c0_33], %64 {strides = array<i32>} : memref<1x16x128xf32, #tpu.memory_space<vmem>>, vector<1x16x128xf32>,
    return
  }
  func.func @transform_0(%arg0: i32, %arg1: i32) -> (i32, i32, i32) {
    %c0_i32 = arith.constant 0 : i32
    %c0_i32_0 = arith.constant 0 : i32
    %c0_i32_1 = arith.constant 0 : i32
    return %arg0, %c0_i32, %c0_i32_0 : i32, i32, i32
  }
  func.func @transform_1(%arg0: i32, %arg1: i32) -> (i32, i32) {
    %c0_i32 = arith.constant 0 : i32
    %c0_i32_0 = arith.constant 0 : i32
    %c0_i32_1 = arith.constant 0 : i32
    return %c0_i32, %c0_i32_0 : i32, i32
  }
  func.func @transform_2(%arg0: i32, %arg1: i32) -> (i32, i32) {
    %c0_i32 = arith.constant 0 : i32
    %c0_i32_0 = arith.constant 0 : i32
    %c0_i32_1 = arith.constant 0 : i32
    return %c0_i32, %c0_i32_0 : i32, i32
  }
  func.func @transform_3(%arg0: i32, %arg1: i32) -> (i32, i32) {
    %c0_i32 = arith.constant 0 : i32
    %c0_i32_0 = arith.constant 0 : i32
    %c0_i32_1 = arith.constant 0 : i32
    return %c0_i32, %c0_i32_0 : i32, i32
  }
  func.func @transform_4(%arg0: i32, %arg1: i32) -> (i32, i32) {
    %c0_i32 = arith.constant 0 : i32
    %c0_i32_0 = arith.constant 0 : i32
    %c0_i32_1 = arith.constant 0 : i32
    return %c0_i32, %c0_i32_0 : i32, i32
  }
  func.func @transform_5(%arg0: i32, %arg1: i32) -> (i32, i32) {
    %c0_i32 = arith.constant 0 : i32
    %c0_i32_0 = arith.constant 0 : i32
    %c0_i32_1 = arith.constant 0 : i32
    return %c0_i32, %c0_i32_0 : i32, i32
  }
  func.func @transform_6(%arg0: i32, %arg1: i32) -> (i32, i32) {
    %c0_i32 = arith.constant 0 : i32
    %c0_i32_0 = arith.constant 0 : i32
    %c0_i32_1 = arith.constant 0 : i32
    return %c0_i32, %c0_i32_0 : i32, i32
  }
  func.func @transform_7(%arg0: i32, %arg1: i32) -> (i32, i32) {
    %c0_i32 = arith.constant 0 : i32
    %c0_i32_0 = arith.constant 0 : i32
    %c0_i32_1 = arith.constant 0 : i32
    return %c0_i32, %c0_i32_0 : i32, i32
  }
  func.func @transform_8(%arg0: i32, %arg1: i32) -> (i32, i32) {
    %c0_i32 = arith.constant 0 : i32
    %c0_i32_0 = arith.constant 0 : i32
    %c0_i32_1 = arith.constant 0 : i32
    return %c0_i32, %c0_i32_0 : i32, i32
  }
  func.func @transform_9(%arg0: i32, %arg1: i32) -> (i32, i32, i32) {
    %c0_i32 = arith.constant 0 : i32
    %c0_i32_0 = arith.constant 0 : i32
    return %arg0, %arg1, %c0_i32 : i32, i32, i32
  }
}

</mosaic_0001>

<llo_original>
// kernel: tpu_custom_call.1
$region0: #{tpu_custom_call.1}
  #allocation0 [shape = 'u32[]', space=smem, size = 0x4, offset = 0x4, fixed_abs, tag = 'smem constant byte address 0x4 - core index']
  #allocation1 [shape = 'u32[144,128]{1,0:T(1,128)}', space=vmem, size = 0x12000, scoped, tag = 'internal scratch']
  #allocation2 [shape = 'bf16[4,16,32]{2,1,0:T(16,128)(2,1)}', space=vmem, size = 0x4000, scoped, tag = 'scratch operand']
  #allocation3 [shape = 'bf16[4,16,32]{2,1,0:T(16,128)(2,1)}', space=vmem, size = 0x4000, scoped, tag = 'scratch operand']
  %s0 = inlined_call_operand.hbm [shape: f32[2,16,128], index: 0, kind: input, shape index: {}]
  %s1 = inlined_call_operand.hbm [shape: bf16[128,128], index: 1, kind: input, shape index: {}]
  %s2 = inlined_call_operand.vmem [shape: f32[1,128], index: 2, kind: input, shape index: {}]
  %s3 = inlined_call_operand.hbm [shape: bf16[128,256], index: 3, kind: input, shape index: {}]
  %s4 = inlined_call_operand.vmem [shape: f32[1,256], index: 4, kind: input, shape index: {}]
  %s5 = inlined_call_operand.hbm [shape: bf16[128,128], index: 5, kind: input, shape index: {}]
  %s6 = inlined_call_operand.vmem [shape: f32[1,128], index: 6, kind: input, shape index: {}]
  %s7 = inlined_call_operand.vmem [shape: f32[1,128], index: 7, kind: input, shape index: {}]
  %s8 = inlined_call_operand.vmem [shape: f32[1,128], index: 8, kind: input, shape index: {}]
  %s9 = inlined_call_operand.hbm [shape: f32[2,16,128], index: 9, kind: output, shape index: {}]
  %s10 = sld [smem:[#allocation0]]
  $region89: #{tpu_custom_call.1} parent=0
    _
  %s12 = ssub.s32 1, %s10
  %s13 = scalar_select 0, %s12, %s10
  $region1: #{tpu_custom_call.1} parent=0
    #allocation4 [shape = 'u8[8192]{0}', space=vmem, size = 0x2000, scoped, tag = 'input window, operand 0, single buffered']
    #allocation5 [shape = 's32[2]{0}', space=sflag, size = 0x8, scoped, tag = 'scoped memory for tpu_custom_call.1']
    #allocation6 [shape = 's32[2]{0}', space=sflag, size = 0x8, scoped, tag = 'scoped memory for tpu_custom_call.1']
    #allocation7 [shape = 'u8[32768]{0}', space=vmem, size = 0x8000, scoped, tag = 'input window, operand 1, single buffered']
    #allocation8 [shape = 's32[1]{0}', space=sflag, size = 0x4, scoped, tag = 'scoped memory for tpu_custom_call.1']
    #allocation9 [shape = 'u8[65536]{0}', space=vmem, size = 0x10000, scoped, tag = 'input window, operand 3, single buffered']
    #allocation10 [shape = 'u8[32768]{0}', space=vmem, size = 0x8000, scoped, tag = 'input window, operand 5, single buffered']
    #allocation11 [shape = 's32[1]{0}', space=sflag, size = 0x4, scoped, tag = 'scoped memory for tpu_custom_call.1']
    #allocation12 [shape = 'u8[16384]{0}', space=vmem, size = 0x4000, scoped, tag = 'output window, operand 0']
    %14 = vsyncpa [#allocation5], 0
    %15 = vsyncpa [#allocation8], 0
    %16 = vsyncpa [#allocation11], 0
    %17 = vsyncpa [#allocation6], 0
    %s18 = scalar_lea.sflag [#allocation6], 1
    %19 = vsyncpa %s18, 0
    loop: start=0, step=1, limit=4
    $region2: #{tpu_custom_call.1} parent=1 // loop_pre_header
      _
    $region3: #{tpu_custom_call.1} parent=1 // loop_header
      %s21 = sphi 0, %s25
      %p22 = scmp.ge.s32.totalorder %s21, 4
      %s28 = sphi 0, %s40
      %s29 = sphi 0, %s36
      %s30 = sphi 0, %s28
      %s31 = sphi 0, %s29
      %s32 = sphi 0, %s30
      %s33 = sphi 0, %s31
      %s43 = sphi 0, %s45
      %s46 = sphi 0, %s43
      %s47 = sphi 0, %s46
      %s63 = sphi 0, %s47
      %s67 = sphi 0, %s67
      %s69 = sphi 0, %s67
      %s70 = sphi 0, %s69
      %s84 = sphi 0, %s70
      %s88 = sphi 0, %s88
      %s90 = sphi 0, %s88
      %s91 = sphi 0, %s90
      %s105 = sphi 0, %s91
      %s109 = sphi 0, %s109
      %s111 = sphi 0, %s109
      %s112 = sphi 0, %s111
      %s126 = sphi 0, %s112
      %s130 = sphi 0, %s130
      %s132 = sphi 0, %s130
      %s133 = sphi 0, %s132
      %s147 = sphi 0, %s133
      %s151 = sphi 0, %s151
      %s153 = sphi 0, %s151
      %s154 = sphi 0, %s153
      %s168 = sphi 0, %s154
      %s172 = sphi 0, %s172
      %s174 = sphi 0, %s172
      %s175 = sphi 0, %s174
      %s189 = sphi 0, %s175
      %s193 = sphi 0, %s193
      %s195 = sphi 0, %s193
      %s196 = sphi 0, %s195
      %s210 = sphi 0, %s196
      %s214 = sphi 0, %s214
      %s216 = sphi 0, %s214
      %s217 = sphi 0, %s216
      %s231 = sphi 0, %s217
      %s239 = sphi 0, %s241
      %s242 = sphi 0, %s239
      %s243 = sphi 0, %s242
      %s259 = sphi 0, %s243
    $region4: #{tpu_custom_call.1} parent=1 // loop_header_branch
      %24 = sbr.rel (%p22) target = $region8
    $region5: #{tpu_custom_call.1} parent=1 // loop_body
      %s26 = ssub.s32 %s21, 1
      %s27 = ssub.s32 %s21, 2
      %s34 = sadd.s32 1, %s29
      %p35 = scmp.ge.s32.totalorder %s34, 1
      %s36 = scalar_select %p35, 0, %s34
      %s37 = sadd.s32 1, %s28
      %s38 = scalar_select %p35, %s37, %s28
      %p39 = scmp.ge.s32.totalorder %s38, 2
      %s40 = scalar_select %p39, 0, %s38
      %s41 = ssub.s32 %s28, %s40
      %p42 = scmp.eq.s32.totalorder %s41, 0
      %s44 = sadd.s32 %s43, 1
      %s45 = scalar_select %p42, %s43, %s44
      %p48 = pneg %p42
      %p49 = scmp.eq.s32.totalorder %s21, 1
      %p50 = por %p48, %p49
      %p51 = scmp.ne.s32.totalorder %s43, %s46
      %p52 = scmp.eq.s32.totalorder %s21, 0
      %p53 = por %p51, %p52
      %p54 = scmp.ne.s32.totalorder %s43, %s46
      %p55 = scmp.eq.s32.totalorder %s26, 1
      %p56 = por %p54, %p55
      %p57 = scmp.ne.s32.totalorder %s46, %s47
      %p58 = scmp.eq.s32.totalorder %s26, 0
      %p59 = por %p57, %p58
      %p60 = scmp.ne.s32.totalorder %s46, %s47
      %p61 = scmp.eq.s32.totalorder %s27, 1
      %p62 = por %p60, %p61
      %p64 = scmp.ne.s32.totalorder %s47, %s63
      %p65 = scmp.eq.s32.totalorder %s27, 0
      %p66 = por %p64, %p65
      %s68 = sadd.s32 %s67, 1
      %p71 = scmp.eq.s32.totalorder %s21, 1
      %p72 = scmp.ne.s32.totalorder %s67, %s69
      %p73 = scmp.eq.s32.totalorder %s21, 0
      %p74 = por %p72, %p73
      %p75 = scmp.ne.s32.totalorder %s67, %s69
      %p76 = scmp.eq.s32.totalorder %s26, 1
      %p77 = por %p75, %p76
      %p78 = scmp.ne.s32.totalorder %s69, %s70
      %p79 = scmp.eq.s32.totalorder %s26, 0
      %p80 = por %p78, %p79
      %p81 = scmp.ne.s32.totalorder %s69, %s70
      %p82 = scmp.eq.s32.totalorder %s27, 1
      %p83 = por %p81, %p82
      %p85 = scmp.ne.s32.totalorder %s70, %s84
      %p86 = scmp.eq.s32.totalorder %s27, 0
      %p87 = por %p85, %p86
      %s89 = sadd.s32 %s88, 1
      %p92 = scmp.eq.s32.totalorder %s21, 1
      %p93 = scmp.ne.s32.totalorder %s88, %s90
      %p94 = scmp.eq.s32.totalorder %s21, 0
      %p95 = por %p93, %p94
      %p96 = scmp.ne.s32.totalorder %s88, %s90
      %p97 = scmp.eq.s32.totalorder %s26, 1
      %p98 = por %p96, %p97
      %p99 = scmp.ne.s32.totalorder %s90, %s91
      %p100 = scmp.eq.s32.totalorder %s26, 0
      %p101 = por %p99, %p100
      %p102 = scmp.ne.s32.totalorder %s90, %s91
      %p103 = scmp.eq.s32.totalorder %s27, 1
      %p104 = por %p102, %p103
      %p106 = scmp.ne.s32.totalorder %s91, %s105
      %p107 = scmp.eq.s32.totalorder %s27, 0
      %p108 = por %p106, %p107
      %s110 = sadd.s32 %s109, 1
      %p113 = scmp.eq.s32.totalorder %s21, 1
      %p114 = scmp.ne.s32.totalorder %s109, %s111
      %p115 = scmp.eq.s32.totalorder %s21, 0
      %p116 = por %p114, %p115
      %p117 = scmp.ne.s32.totalorder %s109, %s111
      %p118 = scmp.eq.s32.totalorder %s26, 1
      %p119 = por %p117, %p118
      %p120 = scmp.ne.s32.totalorder %s111, %s112
      %p121 = scmp.eq.s32.totalorder %s26, 0
      %p122 = por %p120, %p121
      %p123 = scmp.ne.s32.totalorder %s111, %s112
      %p124 = scmp.eq.s32.totalorder %s27, 1
      %p125 = por %p123, %p124
      %p127 = scmp.ne.s32.totalorder %s112, %s126
      %p128 = scmp.eq.s32.totalorder %s27, 0
      %p129 = por %p127, %p128
      %s131 = sadd.s32 %s130, 1
      %p134 = scmp.eq.s32.totalorder %s21, 1
      %p135 = scmp.ne.s32.totalorder %s130, %s132
      %p136 = scmp.eq.s32.totalorder %s21, 0
      %p137 = por %p135, %p136
      %p138 = scmp.ne.s32.totalorder %s130, %s132
      %p139 = scmp.eq.s32.totalorder %s26, 1
      %p140 = por %p138, %p139
      %p141 = scmp.ne.s32.totalorder %s132, %s133
      %p142 = scmp.eq.s32.totalorder %s26, 0
      %p143 = por %p141, %p142
      %p144 = scmp.ne.s32.totalorder %s132, %s133
      %p145 = scmp.eq.s32.totalorder %s27, 1
      %p146 = por %p144, %p145
      %p148 = scmp.ne.s32.totalorder %s133, %s147
      %p149 = scmp.eq.s32.totalorder %s27, 0
      %p150 = por %p148, %p149
      %s152 = sadd.s32 %s151, 1
      %p155 = scmp.eq.s32.totalorder %s21, 1
      %p156 = scmp.ne.s32.totalorder %s151, %s153
      %p157 = scmp.eq.s32.totalorder %s21, 0
      %p158 = por %p156, %p157
      %p159 = scmp.ne.s32.totalorder %s151, %s153
      %p160 = scmp.eq.s32.totalorder %s26, 1
      %p161 = por %p159, %p160
      %p162 = scmp.ne.s32.totalorder %s153, %s154
      %p163 = scmp.eq.s32.totalorder %s26, 0
      %p164 = por %p162, %p163
      %p165 = scmp.ne.s32.totalorder %s153, %s154
      %p166 = scmp.eq.s32.totalorder %s27, 1
      %p167 = por %p165, %p166
      %p169 = scmp.ne.s32.totalorder %s154, %s168
      %p170 = scmp.eq.s32.totalorder %s27, 0
      %p171 = por %p169, %p170
      %s173 = sadd.s32 %s172, 1
      %p176 = scmp.eq.s32.totalorder %s21, 1
      %p177 = scmp.ne.s32.totalorder %s172, %s174
      %p178 = scmp.eq.s32.totalorder %s21, 0
      %p179 = por %p177, %p178
      %p180 = scmp.ne.s32.totalorder %s172, %s174
      %p181 = scmp.eq.s32.totalorder %s26, 1
      %p182 = por %p180, %p181
      %p183 = scmp.ne.s32.totalorder %s174, %s175
      %p184 = scmp.eq.s32.totalorder %s26, 0
      %p185 = por %p183, %p184
      %p186 = scmp.ne.s32.totalorder %s174, %s175
      %p187 = scmp.eq.s32.totalorder %s27, 1
      %p188 = por %p186, %p187
      %p190 = scmp.ne.s32.totalorder %s175, %s189
      %p191 = scmp.eq.s32.totalorder %s27, 0
      %p192 = por %p190, %p191
      %s194 = sadd.s32 %s193, 1
      %p197 = scmp.eq.s32.totalorder %s21, 1
      %p198 = scmp.ne.s32.totalorder %s193, %s195
      %p199 = scmp.eq.s32.totalorder %s21, 0
      %p200 = por %p198, %p199
      %p201 = scmp.ne.s32.totalorder %s193, %s195
      %p202 = scmp.eq.s32.totalorder %s26, 1
      %p203 = por %p201, %p202
      %p204 = scmp.ne.s32.totalorder %s195, %s196
      %p205 = scmp.eq.s32.totalorder %s26, 0
      %p206 = por %p204, %p205
      %p207 = scmp.ne.s32.totalorder %s195, %s196
      %p208 = scmp.eq.s32.totalorder %s27, 1
      %p209 = por %p207, %p208
      %p211 = scmp.ne.s32.totalorder %s196, %s210
      %p212 = scmp.eq.s32.totalorder %s27, 0
      %p213 = por %p211, %p212
      %s215 = sadd.s32 %s214, 1
      %p218 = scmp.eq.s32.totalorder %s21, 1
      %p219 = scmp.ne.s32.totalorder %s214, %s216
      %p220 = scmp.eq.s32.totalorder %s21, 0
      %p221 = por %p219, %p220
      %p222 = scmp.ne.s32.totalorder %s214, %s216
      %p223 = scmp.eq.s32.totalorder %s26, 1
      %p224 = por %p222, %p223
      %p225 = scmp.ne.s32.totalorder %s216, %s217
      %p226 = scmp.eq.s32.totalorder %s26, 0
      %p227 = por %p225, %p226
      %p228 = scmp.ne.s32.totalorder %s216, %s217
      %p229 = scmp.eq.s32.totalorder %s27, 1
      %p230 = por %p228, %p229
      %p232 = scmp.ne.s32.totalorder %s217, %s231
      %p233 = scmp.eq.s32.totalorder %s27, 0
      %p234 = por %p232, %p233
      %s235 = ssub.s32 %s28, %s40
      %s236 = ssub.s32 %s29, %s36
      %s237 = sor.u32 %s235, %s236
      %p238 = scmp.eq.s32.totalorder %s237, 0
      %s240 = sadd.s32 %s239, 1
      %s241 = scalar_select %p238, %s239, %s240
      %p244 = pneg %p238
      %p245 = scmp.eq.s32.totalorder %s21, 1
      %p246 = por %p244, %p245
      %p247 = scmp.ne.s32.totalorder %s239, %s242
      %p248 = scmp.eq.s32.totalorder %s21, 0
      %p249 = por %p247, %p248
      %p250 = scmp.ne.s32.totalorder %s239, %s242
      %p251 = scmp.eq.s32.totalorder %s26, 1
      %p252 = por %p250, %p251
      %p253 = scmp.ne.s32.totalorder %s242, %s243
      %p254 = scmp.eq.s32.totalorder %s26, 0
      %p255 = por %p253, %p254
      %p256 = scmp.ne.s32.totalorder %s242, %s243
      %p257 = scmp.eq.s32.totalorder %s27, 1
      %p258 = por %p256, %p257
      %p260 = scmp.ne.s32.totalorder %s243, %s259
      %p261 = scmp.eq.s32.totalorder %s27, 0
      %p262 = por %p260, %p261
      %p263 = scmp.le.s32.totalorder 1, %s21
      %p264 = scmp.lt.s32.totalorder %s21, 3
      %p265 = pnand %p263, %p264
      %p266 = pneg %p265
      // Predicated region
      $region9: #{tpu_custom_call.1} parent=5 // pred_check
        _
      $region10: #{tpu_custom_call.1} parent=5 // pred_check_branch
        %268 = sbr.rel (%p265) target = $region12
      $region11: #{tpu_custom_call.1} parent=5 // pred_region
        %s269 = ssub.s32 %s21, 1
        // Predicated region
        $region13: #{tpu_custom_call.1} parent=11 // pred_check
          %p270 = pneg %p59
        $region14: #{tpu_custom_call.1} parent=11 // pred_check_branch
          %272 = sbr.rel (%p270) target = $region16
        $region15: #{tpu_custom_call.1} parent=11 // pred_region
          %s274 = ssub.s32 256, 256
          %275 = vsyncadd [#allocation5], %s274
          %s276 = smul.addr %s30, 2
          %s277 = smul.addr %s276, 128
          %s278 = scalar_lea.hbm %s0, %s277
          %s279 = sshll.u32 [#allocation4], 4
          %s280 = int_to_ptr.vmem [resolvable:$true] %s279
          %285 = dma.hbm_to_vmem [thread:$0]  %s278, 256, %s280, [#allocation5], 128, 128, 8
        $region16: #{tpu_custom_call.1} parent=11 // pred_fallthru
          _
        // Predicated region
        $region17: #{tpu_custom_call.1} parent=11 // pred_check
          %p286 = pneg %p80
        $region18: #{tpu_custom_call.1} parent=11 // pred_check_branch
          %288 = sbr.rel (%p286) target = $region20
        $region19: #{tpu_custom_call.1} parent=11 // pred_region
          %s290 = ssub.s32 1024, 1024
          %291 = vsyncadd [#allocation8], %s290
          %s292 = sshll.u32 [#allocation7], 4
          %s293 = int_to_ptr.vmem [resolvable:$true] %s292
          %298 = dma.hbm_to_vmem [thread:$0]  %s1, 1024, %s293, [#allocation8], 64, 64, 4
        $region20: #{tpu_custom_call.1} parent=11 // pred_fallthru
          _
        // Predicated region
        $region21: #{tpu_custom_call.1} parent=11 // pred_check
          %p299 = pneg %p101
        $region22: #{tpu_custom_call.1} parent=11 // pred_check_branch
          %301 = sbr.rel (%p299) target = $region24
        $region23: #{tpu_custom_call.1} parent=11 // pred_region
          _
        $region24: #{tpu_custom_call.1} parent=11 // pred_fallthru
          _
        // Predicated region
        $region25: #{tpu_custom_call.1} parent=11 // pred_check
          %p302 = pneg %p122
        $region26: #{tpu_custom_call.1} parent=11 // pred_check_branch
          %304 = sbr.rel (%p302) target = $region28
        $region27: #{tpu_custom_call.1} parent=11 // pred_region
          %s306 = ssub.s32 2048, 2048
          %307 = vsyncadd [#allocation8], %s306
          %s308 = sshll.u32 [#allocation9], 4
          %s309 = int_to_ptr.vmem [resolvable:$true] %s308
          %314 = dma.hbm_to_vmem [thread:$0]  %s3, 2048, %s309, [#allocation8], 128, 128, 8
        $region28: #{tpu_custom_call.1} parent=11 // pred_fallthru
          _
        // Predicated region
        $region29: #{tpu_custom_call.1} parent=11 // pred_check
          %p315 = pneg %p143
        $region30: #{tpu_custom_call.1} parent=11 // pred_check_branch
          %317 = sbr.rel (%p315) target = $region32
        $region31: #{tpu_custom_call.1} parent=11 // pred_region
          _
        $region32: #{tpu_custom_call.1} parent=11 // pred_fallthru
          _
        // Predicated region
        $region33: #{tpu_custom_call.1} parent=11 // pred_check
          %p318 = pneg %p164
        $region34: #{tpu_custom_call.1} parent=11 // pred_check_branch
          %320 = sbr.rel (%p318) target = $region36
        $region35: #{tpu_custom_call.1} parent=11 // pred_region
          %s322 = ssub.s32 1024, 1024
          %323 = vsyncadd [#allocation11], %s322
          %s324 = sshll.u32 [#allocation10], 4
          %s325 = int_to_ptr.vmem [resolvable:$true] %s324
          %330 = dma.hbm_to_vmem [thread:$0]  %s5, 1024, %s325, [#allocation11], 64, 64, 4
        $region36: #{tpu_custom_call.1} parent=11 // pred_fallthru
          _
        // Predicated region
        $region37: #{tpu_custom_call.1} parent=11 // pred_check
          %p331 = pneg %p185
        $region38: #{tpu_custom_call.1} parent=11 // pred_check_branch
          %333 = sbr.rel (%p331) target = $region40
        $region39: #{tpu_custom_call.1} parent=11 // pred_region
          _
        $region40: #{tpu_custom_call.1} parent=11 // pred_fallthru
          _
        // Predicated region
        $region41: #{tpu_custom_call.1} parent=11 // pred_check
          %p334 = pneg %p206
        $region42: #{tpu_custom_call.1} parent=11 // pred_check_branch
          %336 = sbr.rel (%p334) target = $region44
        $region43: #{tpu_custom_call.1} parent=11 // pred_region
          _
        $region44: #{tpu_custom_call.1} parent=11 // pred_fallthru
          _
        // Predicated region
        $region45: #{tpu_custom_call.1} parent=11 // pred_check
          %p337 = pneg %p227
        $region46: #{tpu_custom_call.1} parent=11 // pred_check_branch
          %339 = sbr.rel (%p337) target = $region48
        $region47: #{tpu_custom_call.1} parent=11 // pred_region
          _
        $region48: #{tpu_custom_call.1} parent=11 // pred_fallthru
          _
      $region12: #{tpu_custom_call.1} parent=5 // pred_fallthru
        _
      %p340 = scmp.lt.s32.totalorder %s21, 2
      // Predicated region
      $region49: #{tpu_custom_call.1} parent=5 // pred_check
        %p341 = pneg %p340
      $region50: #{tpu_custom_call.1} parent=5 // pred_check_branch
        %343 = sbr.rel (%p341) target = $region52
      $region51: #{tpu_custom_call.1} parent=5 // pred_region
        _
      $region52: #{tpu_custom_call.1} parent=5 // pred_fallthru
        _
      %p344 = scmp.le.s32.totalorder 1, %s21
      %p345 = scmp.lt.s32.totalorder %s21, 3
      %p346 = pnand %p344, %p345
      %p347 = pneg %p346
      // Predicated region
      $region53: #{tpu_custom_call.1} parent=5 // pred_check
        _
      $region54: #{tpu_custom_call.1} parent=5 // pred_check_branch
        %349 = sbr.rel (%p346) target = $region56
      $region55: #{tpu_custom_call.1} parent=5 // pred_region
        %s350 = ssub.s32 %s21, 1
        // Predicated region
        $region57: #{tpu_custom_call.1} parent=55 // pred_check
          %p351 = pneg %p59
        $region58: #{tpu_custom_call.1} parent=55 // pred_check_branch
          %353 = sbr.rel (%p351) target = $region60
        $region59: #{tpu_custom_call.1} parent=55 // pred_region
          %354 = dma.done [#allocation5], 256
        $region60: #{tpu_custom_call.1} parent=55 // pred_fallthru
          _
        // Predicated region
        $region61: #{tpu_custom_call.1} parent=55 // pred_check
          %p355 = pneg %p80
        $region62: #{tpu_custom_call.1} parent=55 // pred_check_branch
          %357 = sbr.rel (%p355) target = $region64
        $region63: #{tpu_custom_call.1} parent=55 // pred_region
          %358 = dma.done [#allocation8], 1024
        $region64: #{tpu_custom_call.1} parent=55 // pred_fallthru
          _
        // Predicated region
        $region65: #{tpu_custom_call.1} parent=55 // pred_check
          %p359 = pneg %p122
        $region66: #{tpu_custom_call.1} parent=55 // pred_check_branch
          %361 = sbr.rel (%p359) target = $region68
        $region67: #{tpu_custom_call.1} parent=55 // pred_region
          %362 = dma.done [#allocation8], 2048
        $region68: #{tpu_custom_call.1} parent=55 // pred_fallthru
          _
        // Predicated region
        $region69: #{tpu_custom_call.1} parent=55 // pred_check
          %p363 = pneg %p164
        $region70: #{tpu_custom_call.1} parent=55 // pred_check_branch
          %365 = sbr.rel (%p363) target = $region72
        $region71: #{tpu_custom_call.1} parent=55 // pred_region
          %366 = dma.done [#allocation11], 1024
        $region72: #{tpu_custom_call.1} parent=55 // pred_fallthru
          _
        %p367 = pneg %p59
        %p368 = pneg %p56
        %p369 = pneg %p80
        %p370 = pneg %p77
        %p371 = pneg %p101
        %p372 = pneg %p98
        %p373 = pneg %p122
        %p374 = pneg %p119
        %p375 = pneg %p143
        %p376 = pneg %p140
        %p377 = pneg %p164
        %p378 = pneg %p161
        %p379 = pneg %p185
        %p380 = pneg %p182
        %p381 = pneg %p206
        %p382 = pneg %p203
        %p383 = pneg %p227
        %p384 = pneg %p224
        %p385 = pneg %p255
        %p386 = pneg %p252
        %s387 = sand.u32 %s242, 1
        %s388 = scalar_lea.sflag [#allocation6], %s387
        %s389 = sand.u32 %s242, 1
        %s390 = smul.addr %s389, 16
        %s391 = scalar_lea.vmem [#allocation12], %s390
        %s392 = smul.u32 2, %s31
        %p394 = scmp.eq.s32.totalorder %s31, 0
        // Predicated region
        $region73: #{tpu_custom_call.1} parent=55 // pred_check
          %p395 = pneg %p394
        $region74: #{tpu_custom_call.1} parent=55 // pred_check_branch
          %397 = sbr.rel (%p395) target = $region76
        $region75: #{tpu_custom_call.1} parent=55 // pred_region
          %v398 = vld [vmem:[#allocation4] sm:$0xff]
          %v399 = vld [vmem:[#allocation4 + $0x8] sm:$0xff]
          %v400 = vpack.c.bf16 %v399, %v398
          %v401 = vld [vmem:[#allocation9] sm:$0xff]
          %v402 = vld [vmem:[#allocation9 + $0x8] sm:$0xff]
          %v403 = vld [vmem:[#allocation9 + $0x10] sm:$0xff]
          %v404 = vld [vmem:[#allocation9 + $0x18] sm:$0xff]
          %v405 = vld [vmem:[#allocation9 + $0x20] sm:$0xff]
          %v406 = vld [vmem:[#allocation9 + $0x28] sm:$0xff]
          %v407 = vld [vmem:[#allocation9 + $0x30] sm:$0xff]
          %v408 = vld [vmem:[#allocation9 + $0x38] sm:$0xff]
          %v409 = vld [vmem:[#allocation9 + $0x40] sm:$0xff]
          %v410 = vld [vmem:[#allocation9 + $0x48] sm:$0xff]
          %v411 = vld [vmem:[#allocation9 + $0x50] sm:$0xff]
          %v412 = vld [vmem:[#allocation9 + $0x58] sm:$0xff]
          %v413 = vld [vmem:[#allocation9 + $0x60] sm:$0xff]
          %v414 = vld [vmem:[#allocation9 + $0x68] sm:$0xff]
          %v415 = vld [vmem:[#allocation9 + $0x70] sm:$0xff]
          %v416 = vld [vmem:[#allocation9 + $0x78] sm:$0xff]
          %v417 = vld [vmem:[%s4] sm:$0x3]
          %v419 = vlaneseq
          %v420 = vshrl.u32 %v419, 7
          %v421 = vsub.s32 0, %v420
          %v422 = vrot.slane %v417, %v421
          %v423 = vlaneseq
          %v424 = vshrl.u32 %v423, 7
          %v425 = vsub.s32 1, %v424
          %v426 = vrot.slane %v417, %v425
          %v445 = vunpack.c.l.b16 %v401
          %v446 = vunpack.c.h.b16 %v401
          %v447 = vunpack.c.l.b16 %v402
          %v448 = vunpack.c.h.b16 %v402
          %v449 = vunpack.c.l.b16 %v403
          %v450 = vunpack.c.h.b16 %v403
          %v451 = vunpack.c.l.b16 %v404
          %v452 = vunpack.c.h.b16 %v404
          %v453 = vunpack.c.l.b16 %v405
          %v454 = vunpack.c.h.b16 %v405
          %v455 = vunpack.c.l.b16 %v406
          %v456 = vunpack.c.h.b16 %v406
          %v457 = vunpack.c.l.b16 %v407
          %v458 = vunpack.c.h.b16 %v407
          %v459 = vunpack.c.l.b16 %v408
          %v460 = vunpack.c.h.b16 %v408
          %v461 = vunpack.c.l.b16 %v409
          %v462 = vunpack.c.h.b16 %v409
          %v463 = vunpack.c.l.b16 %v410
          %v464 = vunpack.c.h.b16 %v410
          %v465 = vunpack.c.l.b16 %v411
          %v466 = vunpack.c.h.b16 %v411
          %v467 = vunpack.c.l.b16 %v412
          %v468 = vunpack.c.h.b16 %v412
          %v469 = vunpack.c.l.b16 %v413
          %v470 = vunpack.c.h.b16 %v413
          %v471 = vunpack.c.l.b16 %v414
          %v472 = vunpack.c.h.b16 %v414
          %v473 = vunpack.c.l.b16 %v415
          %v474 = vunpack.c.h.b16 %v415
          %v475 = vunpack.c.l.b16 %v416
          %v476 = vunpack.c.h.b16 %v416
          %v477 = vpack.c.b16 %v447, %v445
          %v478 = vpack.c.b16 %v448, %v446
          %v479 = vpack.c.b16 %v451, %v449
          %v480 = vpack.c.b16 %v452, %v450
          %v481 = vpack.c.b16 %v455, %v453
          %v482 = vpack.c.b16 %v456, %v454
          %v483 = vpack.c.b16 %v459, %v457
          %v484 = vpack.c.b16 %v460, %v458
          %v485 = vpack.c.b16 %v463, %v461
          %v486 = vpack.c.b16 %v464, %v462
          %v487 = vpack.c.b16 %v467, %v465
          %v488 = vpack.c.b16 %v468, %v466
          %v489 = vpack.c.b16 %v471, %v469
          %v490 = vpack.c.b16 %v472, %v470
          %v491 = vpack.c.b16 %v475, %v473
          %v492 = vpack.c.b16 %v476, %v474
          %509 = vmatprep.subr.bf16.mxu0 %v478
          %510 = vmatpush1.bf16.msra.mxu0 %v477
          %511 = vmatprep.subr.bf16.mxu0 %v480
          %512 = vmatpush1.bf16.msra.mxu0 %v479
          %513 = vmatprep.subr.bf16.mxu0 %v482
          %514 = vmatpush1.bf16.msra.mxu0 %v481
          %515 = vmatprep.subr.bf16.mxu0 %v484
          %516 = vmatpush1.bf16.msra.mxu0 %v483
          %517 = vmatprep.subr.bf16.mxu0 %v486
          %518 = vmatpush1.bf16.msra.mxu0 %v485
          %519 = vmatprep.subr.bf16.mxu0 %v488
          %520 = vmatpush1.bf16.msra.mxu0 %v487
          %521 = vmatprep.subr.bf16.mxu0 %v490
          %522 = vmatpush1.bf16.msra.mxu0 %v489
          %523 = vmatprep.subr.bf16.mxu0 %v492
          %524 = vmatpush1.bf16.msra.mxu0 %v491
          %525 = vmatprep.subr.bf16.mxu0 0
          %526 = vmatpush1.bf16.msra.mxu0 0
          %527 = vmatprep.subr.bf16.mxu0 0
          %528 = vmatpush1.bf16.msra.mxu0 0
          %529 = vmatprep.subr.bf16.mxu0 0
          %530 = vmatpush1.bf16.msra.mxu0 0
          %531 = vmatprep.subr.bf16.mxu0 0
          %532 = vmatpush1.bf16.msra.mxu0 0
          %533 = vmatprep.subr.bf16.mxu0 0
          %534 = vmatpush1.bf16.msra.mxu0 0
          %535 = vmatprep.subr.bf16.mxu0 0
          %536 = vmatpush1.bf16.msra.mxu0 0
          %537 = vmatprep.subr.bf16.mxu0 0
          %538 = vmatpush1.bf16.msra.mxu0 0
          %539 = vmatprep.subr.bf16.mxu0 0
          %540 = vmatpush1.bf16.msra.mxu0 0
          %541 = vmatprep.mubr.bf16.mxu0 0
          %542 = vmatmul.mubr.bf16.gmra.mrb[0].mxu0 %v400
          %v543 = vpop.f32.mrb[0].mxu0
          %v544 = vadd.f32 %v422, %v543
          %v545 = vpop.f32.mrb[0].mxu0
          %v546 = vadd.f32 %v426, %v545
          %v547 = vpop.f32.mrb[0].mxu0
          %v548 = vadd.f32 %v422, %v547
          %v549 = vpop.f32.mrb[0].mxu0
          %v550 = vadd.f32 %v426, %v549
          %551 = vdwg.mxu0
          %v552 = vpack.c.bf16 %v548, %v544
          %v553 = vpack.c.bf16 %v550, %v546
          %555 = vrot.lane.b32.xlu0 %v552, 96
          %v556 = vpop.permute.xlu0 %555
          %557 = vrot.lane.b32.xlu0 %v552, 64
          %v558 = vpop.permute.xlu0 %557
          %559 = vrot.lane.b32.xlu0 %v552, 32
          %v560 = vpop.permute.xlu0 %559
          %v563 = vpack.i.b16 %v556, %v552
          %v565 = vshrl.u32 %v552, 16
          %v566 = vshrl.u32 %v556, 16
          %v567 = vpack.i.b16 %v566, %v565
          %v571 = vpack.i.b16 %v560, %v558
          %v573 = vshrl.u32 %v558, 16
          %v574 = vshrl.u32 %v560, 16
          %v575 = vpack.i.b16 %v574, %v573
          %v578 = vpack.i.b16 0, 0
          %v580 = vshrl.u32 0, 16
          %v581 = vpack.i.b16 %v580, %v580
          %v583 = vcombine.high %v563, %v578
          %v585 = vunpack.c.l.s4 1983009808
          %v586 = vunpack.c.0.s8 %v585
          %v587 = vlaneseq
          %v588 = vshrl.u32 %v587, 7
          %v589 = vsub.s32 %v586, %v588
          %v590 = vrot.slane %v563, %v589
          %v592 = vunpack.c.l.s4 1983009808
          %v593 = vunpack.c.0.s8 %v592
          %v594 = vlaneseq
          %v595 = vshrl.u32 %v594, 7
          %v596 = vsub.s32 %v593, %v595
          %v597 = vrot.slane %v583, %v596
          %v598 = vcombine.high %v571, %v578
          %v600 = vunpack.c.l.s4 1983009808
          %v601 = vunpack.c.0.s8 %v600
          %v602 = vlaneseq
          %v603 = vshrl.u32 %v602, 7
          %v604 = vsub.s32 %v601, %v603
          %v605 = vrot.slane %v571, %v604
          %v607 = vunpack.c.l.s4 1983009808
          %v608 = vunpack.c.0.s8 %v607
          %v609 = vlaneseq
          %v610 = vshrl.u32 %v609, 7
          %v611 = vsub.s32 %v608, %v610
          %v612 = vrot.slane %v598, %v611
          %v613 = vcombine.low %v590, %v605
          %v614 = vcombine.high %v590, %v605
          %v616 = vunpack.c.l.s4 1934713408
          %v617 = vunpack.c.0.s8 %v616
          %v618 = vlaneseq
          %v619 = vshrl.u32 %v618, 7
          %v620 = vsub.s32 %v617, %v619
          %v621 = vrot.slane %v613, %v620
          %v623 = vunpack.c.l.s4 1934713408
          %v624 = vunpack.c.0.s8 %v623
          %v625 = vlaneseq
          %v626 = vshrl.u32 %v625, 7
          %v627 = vsub.s32 %v624, %v626
          %v628 = vrot.slane %v614, %v627
          %v629 = vcombine.low %v597, %v612
          %v630 = vcombine.high %v597, %v612
          %v632 = vunpack.c.l.s4 1934713408
          %v633 = vunpack.c.0.s8 %v632
          %v634 = vlaneseq
          %v635 = vshrl.u32 %v634, 7
          %v636 = vsub.s32 %v633, %v635
          %v637 = vrot.slane %v629, %v636
          %v639 = vunpack.c.l.s4 1934713408
          %v640 = vunpack.c.0.s8 %v639
          %v641 = vlaneseq
          %v642 = vshrl.u32 %v641, 7
          %v643 = vsub.s32 %v640, %v642
          %v644 = vrot.slane %v630, %v643
          %v645 = vcombine.high %v621, 0
          %v646 = vcombine.high %v628, 0
          %v647 = vcombine.high %v637, 0
          %v648 = vcombine.high %v644, 0
          %v649 = vcombine.high %v567, %v581
          %v651 = vunpack.c.l.s4 1983009808
          %v652 = vunpack.c.0.s8 %v651
          %v653 = vlaneseq
          %v654 = vshrl.u32 %v653, 7
          %v655 = vsub.s32 %v652, %v654
          %v656 = vrot.slane %v567, %v655
          %v658 = vunpack.c.l.s4 1983009808
          %v659 = vunpack.c.0.s8 %v658
          %v660 = vlaneseq
          %v661 = vshrl.u32 %v660, 7
          %v662 = vsub.s32 %v659, %v661
          %v663 = vrot.slane %v649, %v662
          %v664 = vcombine.high %v575, %v581
          %v666 = vunpack.c.l.s4 1983009808
          %v667 = vunpack.c.0.s8 %v666
          %v668 = vlaneseq
          %v669 = vshrl.u32 %v668, 7
          %v670 = vsub.s32 %v667, %v669
          %v671 = vrot.slane %v575, %v670
          %v673 = vunpack.c.l.s4 1983009808
          %v674 = vunpack.c.0.s8 %v673
          %v675 = vlaneseq
          %v676 = vshrl.u32 %v675, 7
          %v677 = vsub.s32 %v674, %v676
          %v678 = vrot.slane %v664, %v677
          %v679 = vcombine.low %v656, %v671
          %v680 = vcombine.high %v656, %v671
          %v682 = vunpack.c.l.s4 1934713408
          %v683 = vunpack.c.0.s8 %v682
          %v684 = vlaneseq
          %v685 = vshrl.u32 %v684, 7
          %v686 = vsub.s32 %v683, %v685
          %v687 = vrot.slane %v679, %v686
          %v689 = vunpack.c.l.s4 1934713408
          %v690 = vunpack.c.0.s8 %v689
          %v691 = vlaneseq
          %v692 = vshrl.u32 %v691, 7
          %v693 = vsub.s32 %v690, %v692
          %v694 = vrot.slane %v680, %v693
          %v695 = vcombine.low %v663, %v678
          %v696 = vcombine.high %v663, %v678
          %v698 = vunpack.c.l.s4 1934713408
          %v699 = vunpack.c.0.s8 %v698
          %v700 = vlaneseq
          %v701 = vshrl.u32 %v700, 7
          %v702 = vsub.s32 %v699, %v701
          %v703 = vrot.slane %v695, %v702
          %v705 = vunpack.c.l.s4 1934713408
          %v706 = vunpack.c.0.s8 %v705
          %v707 = vlaneseq
          %v708 = vshrl.u32 %v707, 7
          %v709 = vsub.s32 %v706, %v708
          %v710 = vrot.slane %v696, %v709
          %v711 = vcombine.high %v687, 0
          %v712 = vcombine.high %v694, 0
          %v713 = vcombine.high %v703, 0
          %v714 = vcombine.high %v710, 0
          %716 = vrot.lane.b32.xlu0 %v553, 96
          %v717 = vpop.permute.xlu0 %716
          %718 = vrot.lane.b32.xlu0 %v553, 64
          %v719 = vpop.permute.xlu0 %718
          %720 = vrot.lane.b32.xlu0 %v553, 32
          %v721 = vpop.permute.xlu0 %720
          %v724 = vpack.i.b16 %v717, %v553
          %v726 = vshrl.u32 %v553, 16
          %v727 = vshrl.u32 %v717, 16
          %v728 = vpack.i.b16 %v727, %v726
          %v732 = vpack.i.b16 %v721, %v719
          %v734 = vshrl.u32 %v719, 16
          %v735 = vshrl.u32 %v721, 16
          %v736 = vpack.i.b16 %v735, %v734
          %v738 = vcombine.high %v724, %v578
          %v740 = vunpack.c.l.s4 1983009808
          %v741 = vunpack.c.0.s8 %v740
          %v742 = vlaneseq
          %v743 = vshrl.u32 %v742, 7
          %v744 = vsub.s32 %v741, %v743
          %v745 = vrot.slane %v724, %v744
          %v747 = vunpack.c.l.s4 1983009808
          %v748 = vunpack.c.0.s8 %v747
          %v749 = vlaneseq
          %v750 = vshrl.u32 %v749, 7
          %v751 = vsub.s32 %v748, %v750
          %v752 = vrot.slane %v738, %v751
          %v753 = vcombine.high %v732, %v578
          %v755 = vunpack.c.l.s4 1983009808
          %v756 = vunpack.c.0.s8 %v755
          %v757 = vlaneseq
          %v758 = vshrl.u32 %v757, 7
          %v759 = vsub.s32 %v756, %v758
          %v760 = vrot.slane %v732, %v759
          %v762 = vunpack.c.l.s4 1983009808
          %v763 = vunpack.c.0.s8 %v762
          %v764 = vlaneseq
          %v765 = vshrl.u32 %v764, 7
          %v766 = vsub.s32 %v763, %v765
          %v767 = vrot.slane %v753, %v766
          %v768 = vcombine.low %v745, %v760
          %v769 = vcombine.high %v745, %v760
          %v771 = vunpack.c.l.s4 1934713408
          %v772 = vunpack.c.0.s8 %v771
          %v773 = vlaneseq
          %v774 = vshrl.u32 %v773, 7
          %v775 = vsub.s32 %v772, %v774
          %v776 = vrot.slane %v768, %v775
          %v778 = vunpack.c.l.s4 1934713408
          %v779 = vunpack.c.0.s8 %v778
          %v780 = vlaneseq
          %v781 = vshrl.u32 %v780, 7
          %v782 = vsub.s32 %v779, %v781
          %v783 = vrot.slane %v769, %v782
          %v784 = vcombine.low %v752, %v767
          %v785 = vcombine.high %v752, %v767
          %v787 = vunpack.c.l.s4 1934713408
          %v788 = vunpack.c.0.s8 %v787
          %v789 = vlaneseq
          %v790 = vshrl.u32 %v789, 7
          %v791 = vsub.s32 %v788, %v790
          %v792 = vrot.slane %v784, %v791
          %v794 = vunpack.c.l.s4 1934713408
          %v795 = vunpack.c.0.s8 %v794
          %v796 = vlaneseq
          %v797 = vshrl.u32 %v796, 7
          %v798 = vsub.s32 %v795, %v797
          %v799 = vrot.slane %v785, %v798
          %v800 = vcombine.high %v776, 0
          %v801 = vcombine.high %v783, 0
          %v802 = vcombine.high %v792, 0
          %v803 = vcombine.high %v799, 0
          %v804 = vcombine.high %v728, %v581
          %v806 = vunpack.c.l.s4 1983009808
          %v807 = vunpack.c.0.s8 %v806
          %v808 = vlaneseq
          %v809 = vshrl.u32 %v808, 7
          %v810 = vsub.s32 %v807, %v809
          %v811 = vrot.slane %v728, %v810
          %v813 = vunpack.c.l.s4 1983009808
          %v814 = vunpack.c.0.s8 %v813
          %v815 = vlaneseq
          %v816 = vshrl.u32 %v815, 7
          %v817 = vsub.s32 %v814, %v816
          %v818 = vrot.slane %v804, %v817
          %v819 = vcombine.high %v736, %v581
          %v821 = vunpack.c.l.s4 1983009808
          %v822 = vunpack.c.0.s8 %v821
          %v823 = vlaneseq
          %v824 = vshrl.u32 %v823, 7
          %v825 = vsub.s32 %v822, %v824
          %v826 = vrot.slane %v736, %v825
          %v828 = vunpack.c.l.s4 1983009808
          %v829 = vunpack.c.0.s8 %v828
          %v830 = vlaneseq
          %v831 = vshrl.u32 %v830, 7
          %v832 = vsub.s32 %v829, %v831
          %v833 = vrot.slane %v819, %v832
          %v834 = vcombine.low %v811, %v826
          %v835 = vcombine.high %v811, %v826
          %v837 = vunpack.c.l.s4 1934713408
          %v838 = vunpack.c.0.s8 %v837
          %v839 = vlaneseq
          %v840 = vshrl.u32 %v839, 7
          %v841 = vsub.s32 %v838, %v840
          %v842 = vrot.slane %v834, %v841
          %v844 = vunpack.c.l.s4 1934713408
          %v845 = vunpack.c.0.s8 %v844
          %v846 = vlaneseq
          %v847 = vshrl.u32 %v846, 7
          %v848 = vsub.s32 %v845, %v847
          %v849 = vrot.slane %v835, %v848
          %v850 = vcombine.low %v818, %v833
          %v851 = vcombine.high %v818, %v833
          %v853 = vunpack.c.l.s4 1934713408
          %v854 = vunpack.c.0.s8 %v853
          %v855 = vlaneseq
          %v856 = vshrl.u32 %v855, 7
          %v857 = vsub.s32 %v854, %v856
          %v858 = vrot.slane %v850, %v857
          %v860 = vunpack.c.l.s4 1934713408
          %v861 = vunpack.c.0.s8 %v860
          %v862 = vlaneseq
          %v863 = vshrl.u32 %v862, 7
          %v864 = vsub.s32 %v861, %v863
          %v865 = vrot.slane %v851, %v864
          %v866 = vcombine.high %v842, 0
          %v867 = vcombine.high %v849, 0
          %v868 = vcombine.high %v858, 0
          %v869 = vcombine.high %v865, 0
          %v870 = vcombine.low %v621, %v628
          %v872 = vunpack.c.l.s4 1983009808
          %v873 = vunpack.c.0.s8 %v872
          %v874 = vlaneseq
          %v875 = vshrl.u32 %v874, 7
          %v876 = vsub.s32 %v873, %v875
          %v877 = vrot.slane %v870, %v876
          %v878 = vcombine.low %v645, %v646
          %v880 = vunpack.c.l.s4 1983009808
          %v881 = vunpack.c.0.s8 %v880
          %v882 = vlaneseq
          %v883 = vshrl.u32 %v882, 7
          %v884 = vsub.s32 %v881, %v883
          %v885 = vrot.slane %v878, %v884
          %v886 = vcombine.low %v637, %v644
          %v888 = vunpack.c.l.s4 1983009808
          %v889 = vunpack.c.0.s8 %v888
          %v890 = vlaneseq
          %v891 = vshrl.u32 %v890, 7
          %v892 = vsub.s32 %v889, %v891
          %v893 = vrot.slane %v886, %v892
          %v894 = vcombine.low %v647, %v648
          %v896 = vunpack.c.l.s4 1983009808
          %v897 = vunpack.c.0.s8 %v896
          %v898 = vlaneseq
          %v899 = vshrl.u32 %v898, 7
          %v900 = vsub.s32 %v897, %v899
          %v901 = vrot.slane %v894, %v900
          %v902 = vcombine.low %v877, %v885
          %v904 = vunpack.c.l.s4 1934713408
          %v905 = vunpack.c.0.s8 %v904
          %v906 = vlaneseq
          %v907 = vshrl.u32 %v906, 7
          %v908 = vsub.s32 %v905, %v907
          %v909 = vrot.slane %v902, %v908
          %v910 = vcombine.low %v893, %v901
          %v912 = vunpack.c.l.s4 1934713408
          %v913 = vunpack.c.0.s8 %v912
          %v914 = vlaneseq
          %v915 = vshrl.u32 %v914, 7
          %v916 = vsub.s32 %v913, %v915
          %v917 = vrot.slane %v910, %v916
          %v918 = vcombine.low %v909, %v917
          %v919 = vcombine.high %v909, %v917
          %v920 = vcombine.low %v687, %v694
          %v922 = vunpack.c.l.s4 1983009808
          %v923 = vunpack.c.0.s8 %v922
          %v924 = vlaneseq
          %v925 = vshrl.u32 %v924, 7
          %v926 = vsub.s32 %v923, %v925
          %v927 = vrot.slane %v920, %v926
          %v928 = vcombine.low %v711, %v712
          %v930 = vunpack.c.l.s4 1983009808
          %v931 = vunpack.c.0.s8 %v930
          %v932 = vlaneseq
          %v933 = vshrl.u32 %v932, 7
          %v934 = vsub.s32 %v931, %v933
          %v935 = vrot.slane %v928, %v934
          %v936 = vcombine.low %v703, %v710
          %v938 = vunpack.c.l.s4 1983009808
          %v939 = vunpack.c.0.s8 %v938
          %v940 = vlaneseq
          %v941 = vshrl.u32 %v940, 7
          %v942 = vsub.s32 %v939, %v941
          %v943 = vrot.slane %v936, %v942
          %v944 = vcombine.low %v713, %v714
          %v946 = vunpack.c.l.s4 1983009808
          %v947 = vunpack.c.0.s8 %v946
          %v948 = vlaneseq
          %v949 = vshrl.u32 %v948, 7
          %v950 = vsub.s32 %v947, %v949
          %v951 = vrot.slane %v944, %v950
          %v952 = vcombine.low %v927, %v935
          %v954 = vunpack.c.l.s4 1934713408
          %v955 = vunpack.c.0.s8 %v954
          %v956 = vlaneseq
          %v957 = vshrl.u32 %v956, 7
          %v958 = vsub.s32 %v955, %v957
          %v959 = vrot.slane %v952, %v958
          %v960 = vcombine.low %v943, %v951
          %v962 = vunpack.c.l.s4 1934713408
          %v963 = vunpack.c.0.s8 %v962
          %v964 = vlaneseq
          %v965 = vshrl.u32 %v964, 7
          %v966 = vsub.s32 %v963, %v965
          %v967 = vrot.slane %v960, %v966
          %v968 = vcombine.low %v959, %v967
          %v969 = vcombine.high %v959, %v967
          %v972 = vpack.i.b16 %v968, %v918
          %v974 = vshrl.u32 %v918, 16
          %v975 = vshrl.u32 %v968, 16
          %v976 = vpack.i.b16 %v975, %v974
          %v980 = vpack.i.b16 %v969, %v919
          %v982 = vshrl.u32 %v919, 16
          %v983 = vshrl.u32 %v969, 16
          %v984 = vpack.i.b16 %v983, %v982
          %vm986 = vcmask 261120
          %987 = vst.msk [vmem:[#allocation2] sm:$0xff] %vm986, %v972
          %988 = vst.msk [vmem:[#allocation2 + $0x8] sm:$0xff] %vm986, %v976
          %989 = vst.msk [vmem:[#allocation2 + $0x10] sm:$0xff] %vm986, %v980
          %990 = vst.msk [vmem:[#allocation2 + $0x18] sm:$0xff] %vm986, %v984
          %v991 = vcombine.low %v776, %v783
          %v993 = vunpack.c.l.s4 1983009808
          %v994 = vunpack.c.0.s8 %v993
          %v995 = vlaneseq
          %v996 = vshrl.u32 %v995, 7
          %v997 = vsub.s32 %v994, %v996
          %v998 = vrot.slane %v991, %v997
          %v999 = vcombine.low %v800, %v801
          %v1001 = vunpack.c.l.s4 1983009808
          %v1002 = vunpack.c.0.s8 %v1001
          %v1003 = vlaneseq
          %v1004 = vshrl.u32 %v1003, 7
          %v1005 = vsub.s32 %v1002, %v1004
          %v1006 = vrot.slane %v999, %v1005
          %v1007 = vcombine.low %v792, %v799
          %v1009 = vunpack.c.l.s4 1983009808
          %v1010 = vunpack.c.0.s8 %v1009
          %v1011 = vlaneseq
          %v1012 = vshrl.u32 %v1011, 7
          %v1013 = vsub.s32 %v1010, %v1012
          %v1014 = vrot.slane %v1007, %v1013
          %v1015 = vcombine.low %v802, %v803
          %v1017 = vunpack.c.l.s4 1983009808
          %v1018 = vunpack.c.0.s8 %v1017
          %v1019 = vlaneseq
          %v1020 = vshrl.u32 %v1019, 7
          %v1021 = vsub.s32 %v1018, %v1020
          %v1022 = vrot.slane %v1015, %v1021
          %v1023 = vcombine.low %v998, %v1006
          %v1025 = vunpack.c.l.s4 1934713408
          %v1026 = vunpack.c.0.s8 %v1025
          %v1027 = vlaneseq
          %v1028 = vshrl.u32 %v1027, 7
          %v1029 = vsub.s32 %v1026, %v1028
          %v1030 = vrot.slane %v1023, %v1029
          %v1031 = vcombine.low %v1014, %v1022
          %v1033 = vunpack.c.l.s4 1934713408
          %v1034 = vunpack.c.0.s8 %v1033
          %v1035 = vlaneseq
          %v1036 = vshrl.u32 %v1035, 7
          %v1037 = vsub.s32 %v1034, %v1036
          %v1038 = vrot.slane %v1031, %v1037
          %v1039 = vcombine.low %v1030, %v1038
          %v1040 = vcombine.high %v1030, %v1038
          %v1041 = vcombine.low %v842, %v849
          %v1043 = vunpack.c.l.s4 1983009808
          %v1044 = vunpack.c.0.s8 %v1043
          %v1045 = vlaneseq
          %v1046 = vshrl.u32 %v1045, 7
          %v1047 = vsub.s32 %v1044, %v1046
          %v1048 = vrot.slane %v1041, %v1047
          %v1049 = vcombine.low %v866, %v867
          %v1051 = vunpack.c.l.s4 1983009808
          %v1052 = vunpack.c.0.s8 %v1051
          %v1053 = vlaneseq
          %v1054 = vshrl.u32 %v1053, 7
          %v1055 = vsub.s32 %v1052, %v1054
          %v1056 = vrot.slane %v1049, %v1055
          %v1057 = vcombine.low %v858, %v865
          %v1059 = vunpack.c.l.s4 1983009808
          %v1060 = vunpack.c.0.s8 %v1059
          %v1061 = vlaneseq
          %v1062 = vshrl.u32 %v1061, 7
          %v1063 = vsub.s32 %v1060, %v1062
          %v1064 = vrot.slane %v1057, %v1063
          %v1065 = vcombine.low %v868, %v869
          %v1067 = vunpack.c.l.s4 1983009808
          %v1068 = vunpack.c.0.s8 %v1067
          %v1069 = vlaneseq
          %v1070 = vshrl.u32 %v1069, 7
          %v1071 = vsub.s32 %v1068, %v1070
          %v1072 = vrot.slane %v1065, %v1071
          %v1073 = vcombine.low %v1048, %v1056
          %v1075 = vunpack.c.l.s4 1934713408
          %v1076 = vunpack.c.0.s8 %v1075
          %v1077 = vlaneseq
          %v1078 = vshrl.u32 %v1077, 7
          %v1079 = vsub.s32 %v1076, %v1078
          %v1080 = vrot.slane %v1073, %v1079
          %v1081 = vcombine.low %v1064, %v1072
          %v1083 = vunpack.c.l.s4 1934713408
          %v1084 = vunpack.c.0.s8 %v1083
          %v1085 = vlaneseq
          %v1086 = vshrl.u32 %v1085, 7
          %v1087 = vsub.s32 %v1084, %v1086
          %v1088 = vrot.slane %v1081, %v1087
          %v1089 = vcombine.low %v1080, %v1088
          %v1090 = vcombine.high %v1080, %v1088
          %v1093 = vpack.i.b16 %v1089, %v1039
          %v1095 = vshrl.u32 %v1039, 16
          %v1096 = vshrl.u32 %v1089, 16
          %v1097 = vpack.i.b16 %v1096, %v1095
          %v1101 = vpack.i.b16 %v1090, %v1040
          %v1103 = vshrl.u32 %v1040, 16
          %v1104 = vshrl.u32 %v1090, 16
          %v1105 = vpack.i.b16 %v1104, %v1103
          %1107 = vst.msk [vmem:[#allocation3] sm:$0xff] %vm986, %v1093
          %1108 = vst.msk [vmem:[#allocation3 + $0x8] sm:$0xff] %vm986, %v1097
          %1109 = vst.msk [vmem:[#allocation3 + $0x10] sm:$0xff] %vm986, %v1101
          %1110 = vst.msk [vmem:[#allocation3 + $0x18] sm:$0xff] %vm986, %v1105
        $region76: #{tpu_custom_call.1} parent=55 // pred_fallthru
          _
        %v1111 = vld [vmem:[#allocation4] sm:$0xff]
        %v1112 = vld [vmem:[#allocation4 + $0x8] sm:$0xff]
        %v1113 = vpack.c.bf16 %v1112, %v1111
        %v1114 = vld [vmem:[#allocation7] sm:$0xf]
        %v1115 = vld [vmem:[#allocation7 + $0x4] sm:$0xf]
        %v1116 = vld [vmem:[#allocation7 + $0x8] sm:$0xf]
        %v1117 = vld [vmem:[#allocation7 + $0xc] sm:$0xf]
        %v1118 = vld [vmem:[#allocation7 + $0x10] sm:$0xf]
        %v1119 = vld [vmem:[#allocation7 + $0x14] sm:$0xf]
        %v1120 = vld [vmem:[#allocation7 + $0x18] sm:$0xf]
        %v1121 = vld [vmem:[#allocation7 + $0x1c] sm:$0xf]
        %v1122 = vld [vmem:[#allocation7 + $0x20] sm:$0xf]
        %v1123 = vld [vmem:[#allocation7 + $0x24] sm:$0xf]
        %v1124 = vld [vmem:[#allocation7 + $0x28] sm:$0xf]
        %v1125 = vld [vmem:[#allocation7 + $0x2c] sm:$0xf]
        %v1126 = vld [vmem:[#allocation7 + $0x30] sm:$0xf]
        %v1127 = vld [vmem:[#allocation7 + $0x34] sm:$0xf]
        %v1128 = vld [vmem:[#allocation7 + $0x38] sm:$0xf]
        %v1129 = vld [vmem:[#allocation7 + $0x3c] sm:$0xf]
        %v1130 = vld [vmem:[%s2] sm:$0x1]
        %v1132 = vlaneseq
        %v1133 = vshrl.u32 %v1132, 7
        %v1134 = vsub.s32 0, %v1133
        %v1135 = vrot.slane %v1130, %v1134
        %v1153 = vunpack.c.l.b16 %v1114
        %v1154 = vunpack.c.l.b16 %v1115
        %v1155 = vunpack.c.l.b16 %v1116
        %v1156 = vunpack.c.l.b16 %v1117
        %v1157 = vunpack.c.l.b16 %v1118
        %v1158 = vunpack.c.l.b16 %v1119
        %v1159 = vunpack.c.l.b16 %v1120
        %v1160 = vunpack.c.l.b16 %v1121
        %v1161 = vunpack.c.l.b16 %v1122
        %v1162 = vunpack.c.l.b16 %v1123
        %v1163 = vunpack.c.l.b16 %v1124
        %v1164 = vunpack.c.l.b16 %v1125
        %v1165 = vunpack.c.l.b16 %v1126
        %v1166 = vunpack.c.l.b16 %v1127
        %v1167 = vunpack.c.l.b16 %v1128
        %v1168 = vunpack.c.l.b16 %v1129
        %v1169 = vpack.c.b16 %v1154, %v1153
        %v1170 = vpack.c.b16 %v1156, %v1155
        %v1171 = vpack.c.b16 %v1158, %v1157
        %v1172 = vpack.c.b16 %v1160, %v1159
        %v1173 = vpack.c.b16 %v1162, %v1161
        %v1174 = vpack.c.b16 %v1164, %v1163
        %v1175 = vpack.c.b16 %v1166, %v1165
        %v1176 = vpack.c.b16 %v1168, %v1167
        %1185 = vmatprep.subr.bf16.mxu0 0
        %1186 = vmatpush1.bf16.msra.mxu0 %v1169
        %1187 = vmatprep.subr.bf16.mxu0 0
        %1188 = vmatpush1.bf16.msra.mxu0 %v1170
        %1189 = vmatprep.subr.bf16.mxu0 0
        %1190 = vmatpush1.bf16.msra.mxu0 %v1171
        %1191 = vmatprep.subr.bf16.mxu0 0
        %1192 = vmatpush1.bf16.msra.mxu0 %v1172
        %1193 = vmatprep.subr.bf16.mxu0 0
        %1194 = vmatpush1.bf16.msra.mxu0 %v1173
        %1195 = vmatprep.subr.bf16.mxu0 0
        %1196 = vmatpush1.bf16.msra.mxu0 %v1174
        %1197 = vmatprep.subr.bf16.mxu0 0
        %1198 = vmatpush1.bf16.msra.mxu0 %v1175
        %1199 = vmatprep.subr.bf16.mxu0 0
        %1200 = vmatpush1.bf16.msra.mxu0 %v1176
        %1201 = vmatprep.subr.bf16.mxu0 0
        %1202 = vmatpush1.bf16.msra.mxu0 0
        %1203 = vmatprep.subr.bf16.mxu0 0
        %1204 = vmatpush1.bf16.msra.mxu0 0
        %1205 = vmatprep.subr.bf16.mxu0 0
        %1206 = vmatpush1.bf16.msra.mxu0 0
        %1207 = vmatprep.subr.bf16.mxu0 0
        %1208 = vmatpush1.bf16.msra.mxu0 0
        %1209 = vmatprep.subr.bf16.mxu0 0
        %1210 = vmatpush1.bf16.msra.mxu0 0
        %1211 = vmatprep.subr.bf16.mxu0 0
        %1212 = vmatpush1.bf16.msra.mxu0 0
        %1213 = vmatprep.subr.bf16.mxu0 0
        %1214 = vmatpush1.bf16.msra.mxu0 0
        %1215 = vmatprep.subr.bf16.mxu0 0
        %1216 = vmatpush1.bf16.msra.mxu0 0
        %1217 = vmatprep.mubr.bf16.mxu0 0
        %1218 = vmatmul.mubr.bf16.gmra.mrb[0].mxu0 %v1113
        %v1219 = vpop.f32.mrb[0].mxu0
        %v1220 = vadd.f32 %v1135, %v1219
        %v1221 = vpop.f32.mrb[0].mxu0
        %v1222 = vpop.f32.mrb[0].mxu0
        %v1223 = vadd.f32 %v1135, %v1222
        %v1224 = vpop.f32.mrb[0].mxu0
        %1225 = vdwg.mxu0
        %v1226 = vpack.c.bf16 %v1223, %v1220
        %1228 = vrot.lane.b32.xlu0 %v1226, 96
        %v1229 = vpop.permute.xlu0 %1228
        %1230 = vrot.lane.b32.xlu0 %v1226, 64
        %v1231 = vpop.permute.xlu0 %1230
        %1232 = vrot.lane.b32.xlu0 %v1226, 32
        %v1233 = vpop.permute.xlu0 %1232
        %v1236 = vpack.i.b16 %v1229, %v1226
        %v1238 = vshrl.u32 %v1226, 16
        %v1239 = vshrl.u32 %v1229, 16
        %v1240 = vpack.i.b16 %v1239, %v1238
        %v1244 = vpack.i.b16 %v1233, %v1231
        %v1246 = vshrl.u32 %v1231, 16
        %v1247 = vshrl.u32 %v1233, 16
        %v1248 = vpack.i.b16 %v1247, %v1246
        %v1251 = vpack.i.b16 0, 0
        %v1253 = vshrl.u32 0, 16
        %v1254 = vpack.i.b16 %v1253, %v1253
        %v1256 = vcombine.high %v1236, %v1251
        %v1258 = vunpack.c.l.s4 1983009808
        %v1259 = vunpack.c.0.s8 %v1258
        %v1260 = vlaneseq
        %v1261 = vshrl.u32 %v1260, 7
        %v1262 = vsub.s32 %v1259, %v1261
        %v1263 = vrot.slane %v1236, %v1262
        %v1265 = vunpack.c.l.s4 1983009808
        %v1266 = vunpack.c.0.s8 %v1265
        %v1267 = vlaneseq
        %v1268 = vshrl.u32 %v1267, 7
        %v1269 = vsub.s32 %v1266, %v1268
        %v1270 = vrot.slane %v1256, %v1269
        %v1271 = vcombine.high %v1244, %v1251
        %v1273 = vunpack.c.l.s4 1983009808
        %v1274 = vunpack.c.0.s8 %v1273
        %v1275 = vlaneseq
        %v1276 = vshrl.u32 %v1275, 7
        %v1277 = vsub.s32 %v1274, %v1276
        %v1278 = vrot.slane %v1244, %v1277
        %v1280 = vunpack.c.l.s4 1983009808
        %v1281 = vunpack.c.0.s8 %v1280
        %v1282 = vlaneseq
        %v1283 = vshrl.u32 %v1282, 7
        %v1284 = vsub.s32 %v1281, %v1283
        %v1285 = vrot.slane %v1271, %v1284
        %v1286 = vcombine.low %v1263, %v1278
        %v1287 = vcombine.high %v1263, %v1278
        %v1289 = vunpack.c.l.s4 1934713408
        %v1290 = vunpack.c.0.s8 %v1289
        %v1291 = vlaneseq
        %v1292 = vshrl.u32 %v1291, 7
        %v1293 = vsub.s32 %v1290, %v1292
        %v1294 = vrot.slane %v1286, %v1293
        %v1296 = vunpack.c.l.s4 1934713408
        %v1297 = vunpack.c.0.s8 %v1296
        %v1298 = vlaneseq
        %v1299 = vshrl.u32 %v1298, 7
        %v1300 = vsub.s32 %v1297, %v1299
        %v1301 = vrot.slane %v1287, %v1300
        %v1302 = vcombine.low %v1270, %v1285
        %v1303 = vcombine.high %v1270, %v1285
        %v1305 = vunpack.c.l.s4 1934713408
        %v1306 = vunpack.c.0.s8 %v1305
        %v1307 = vlaneseq
        %v1308 = vshrl.u32 %v1307, 7
        %v1309 = vsub.s32 %v1306, %v1308
        %v1310 = vrot.slane %v1302, %v1309
        %v1312 = vunpack.c.l.s4 1934713408
        %v1313 = vunpack.c.0.s8 %v1312
        %v1314 = vlaneseq
        %v1315 = vshrl.u32 %v1314, 7
        %v1316 = vsub.s32 %v1313, %v1315
        %v1317 = vrot.slane %v1303, %v1316
        %v1318 = vcombine.high %v1294, 0
        %v1319 = vcombine.high %v1301, 0
        %v1320 = vcombine.high %v1310, 0
        %v1321 = vcombine.high %v1317, 0
        %v1322 = vcombine.high %v1240, %v1254
        %v1324 = vunpack.c.l.s4 1983009808
        %v1325 = vunpack.c.0.s8 %v1324
        %v1326 = vlaneseq
        %v1327 = vshrl.u32 %v1326, 7
        %v1328 = vsub.s32 %v1325, %v1327
        %v1329 = vrot.slane %v1240, %v1328
        %v1331 = vunpack.c.l.s4 1983009808
        %v1332 = vunpack.c.0.s8 %v1331
        %v1333 = vlaneseq
        %v1334 = vshrl.u32 %v1333, 7
        %v1335 = vsub.s32 %v1332, %v1334
        %v1336 = vrot.slane %v1322, %v1335
        %v1337 = vcombine.high %v1248, %v1254
        %v1339 = vunpack.c.l.s4 1983009808
        %v1340 = vunpack.c.0.s8 %v1339
        %v1341 = vlaneseq
        %v1342 = vshrl.u32 %v1341, 7
        %v1343 = vsub.s32 %v1340, %v1342
        %v1344 = vrot.slane %v1248, %v1343
        %v1346 = vunpack.c.l.s4 1983009808
        %v1347 = vunpack.c.0.s8 %v1346
        %v1348 = vlaneseq
        %v1349 = vshrl.u32 %v1348, 7
        %v1350 = vsub.s32 %v1347, %v1349
        %v1351 = vrot.slane %v1337, %v1350
        %v1352 = vcombine.low %v1329, %v1344
        %v1353 = vcombine.high %v1329, %v1344
        %v1355 = vunpack.c.l.s4 1934713408
        %v1356 = vunpack.c.0.s8 %v1355
        %v1357 = vlaneseq
        %v1358 = vshrl.u32 %v1357, 7
        %v1359 = vsub.s32 %v1356, %v1358
        %v1360 = vrot.slane %v1352, %v1359
        %v1362 = vunpack.c.l.s4 1934713408
        %v1363 = vunpack.c.0.s8 %v1362
        %v1364 = vlaneseq
        %v1365 = vshrl.u32 %v1364, 7
        %v1366 = vsub.s32 %v1363, %v1365
        %v1367 = vrot.slane %v1353, %v1366
        %v1368 = vcombine.low %v1336, %v1351
        %v1369 = vcombine.high %v1336, %v1351
        %v1371 = vunpack.c.l.s4 1934713408
        %v1372 = vunpack.c.0.s8 %v1371
        %v1373 = vlaneseq
        %v1374 = vshrl.u32 %v1373, 7
        %v1375 = vsub.s32 %v1372, %v1374
        %v1376 = vrot.slane %v1368, %v1375
        %v1378 = vunpack.c.l.s4 1934713408
        %v1379 = vunpack.c.0.s8 %v1378
        %v1380 = vlaneseq
        %v1381 = vshrl.u32 %v1380, 7
        %v1382 = vsub.s32 %v1379, %v1381
        %v1383 = vrot.slane %v1369, %v1382
        %v1384 = vcombine.high %v1360, 0
        %v1385 = vcombine.high %v1367, 0
        %v1386 = vcombine.high %v1376, 0
        %v1387 = vcombine.high %v1383, 0
        %v1388 = vcombine.low %v1294, %v1301
        %v1390 = vunpack.c.l.s4 1983009808
        %v1391 = vunpack.c.0.s8 %v1390
        %v1392 = vlaneseq
        %v1393 = vshrl.u32 %v1392, 7
        %v1394 = vsub.s32 %v1391, %v1393
        %v1395 = vrot.slane %v1388, %v1394
        %v1396 = vcombine.low %v1318, %v1319
        %v1398 = vunpack.c.l.s4 1983009808
        %v1399 = vunpack.c.0.s8 %v1398
        %v1400 = vlaneseq
        %v1401 = vshrl.u32 %v1400, 7
        %v1402 = vsub.s32 %v1399, %v1401
        %v1403 = vrot.slane %v1396, %v1402
        %v1404 = vcombine.low %v1310, %v1317
        %v1406 = vunpack.c.l.s4 1983009808
        %v1407 = vunpack.c.0.s8 %v1406
        %v1408 = vlaneseq
        %v1409 = vshrl.u32 %v1408, 7
        %v1410 = vsub.s32 %v1407, %v1409
        %v1411 = vrot.slane %v1404, %v1410
        %v1412 = vcombine.low %v1320, %v1321
        %v1414 = vunpack.c.l.s4 1983009808
        %v1415 = vunpack.c.0.s8 %v1414
        %v1416 = vlaneseq
        %v1417 = vshrl.u32 %v1416, 7
        %v1418 = vsub.s32 %v1415, %v1417
        %v1419 = vrot.slane %v1412, %v1418
        %v1420 = vcombine.low %v1395, %v1403
        %v1422 = vunpack.c.l.s4 1934713408
        %v1423 = vunpack.c.0.s8 %v1422
        %v1424 = vlaneseq
        %v1425 = vshrl.u32 %v1424, 7
        %v1426 = vsub.s32 %v1423, %v1425
        %v1427 = vrot.slane %v1420, %v1426
        %v1428 = vcombine.low %v1411, %v1419
        %v1430 = vunpack.c.l.s4 1934713408
        %v1431 = vunpack.c.0.s8 %v1430
        %v1432 = vlaneseq
        %v1433 = vshrl.u32 %v1432, 7
        %v1434 = vsub.s32 %v1431, %v1433
        %v1435 = vrot.slane %v1428, %v1434
        %v1436 = vcombine.low %v1427, %v1435
        %v1437 = vcombine.high %v1427, %v1435
        %v1438 = vcombine.low %v1360, %v1367
        %v1440 = vunpack.c.l.s4 1983009808
        %v1441 = vunpack.c.0.s8 %v1440
        %v1442 = vlaneseq
        %v1443 = vshrl.u32 %v1442, 7
        %v1444 = vsub.s32 %v1441, %v1443
        %v1445 = vrot.slane %v1438, %v1444
        %v1446 = vcombine.low %v1384, %v1385
        %v1448 = vunpack.c.l.s4 1983009808
        %v1449 = vunpack.c.0.s8 %v1448
        %v1450 = vlaneseq
        %v1451 = vshrl.u32 %v1450, 7
        %v1452 = vsub.s32 %v1449, %v1451
        %v1453 = vrot.slane %v1446, %v1452
        %v1454 = vcombine.low %v1376, %v1383
        %v1456 = vunpack.c.l.s4 1983009808
        %v1457 = vunpack.c.0.s8 %v1456
        %v1458 = vlaneseq
        %v1459 = vshrl.u32 %v1458, 7
        %v1460 = vsub.s32 %v1457, %v1459
        %v1461 = vrot.slane %v1454, %v1460
        %v1462 = vcombine.low %v1386, %v1387
        %v1464 = vunpack.c.l.s4 1983009808
        %v1465 = vunpack.c.0.s8 %v1464
        %v1466 = vlaneseq
        %v1467 = vshrl.u32 %v1466, 7
        %v1468 = vsub.s32 %v1465, %v1467
        %v1469 = vrot.slane %v1462, %v1468
        %v1470 = vcombine.low %v1445, %v1453
        %v1472 = vunpack.c.l.s4 1934713408
        %v1473 = vunpack.c.0.s8 %v1472
        %v1474 = vlaneseq
        %v1475 = vshrl.u32 %v1474, 7
        %v1476 = vsub.s32 %v1473, %v1475
        %v1477 = vrot.slane %v1470, %v1476
        %v1478 = vcombine.low %v1461, %v1469
        %v1480 = vunpack.c.l.s4 1934713408
        %v1481 = vunpack.c.0.s8 %v1480
        %v1482 = vlaneseq
        %v1483 = vshrl.u32 %v1482, 7
        %v1484 = vsub.s32 %v1481, %v1483
        %v1485 = vrot.slane %v1478, %v1484
        %v1486 = vcombine.low %v1477, %v1485
        %v1487 = vcombine.high %v1477, %v1485
        %v1490 = vpack.i.b16 %v1486, %v1436
        %v1491 = vshrl.u32 %v1436, 16
        %v1492 = vshrl.u32 %v1486, 16
        %v1493 = vpack.i.b16 %v1492, %v1491
        %v1496 = vpack.i.b16 %v1487, %v1437
        %v1497 = vshrl.u32 %v1437, 16
        %v1498 = vshrl.u32 %v1487, 16
        %v1499 = vpack.i.b16 %v1498, %v1497
        %v1500 = vld [vmem:[#allocation2] sm:$0xff]
        %v1501 = vld [vmem:[#allocation2 + $0x8] sm:$0xff]
        %v1502 = vld [vmem:[#allocation2 + $0x10] sm:$0xff]
        %v1503 = vld [vmem:[#allocation2 + $0x18] sm:$0xff]
        %vm1504 = vcmask 261120
        %v1506 = vsel %vm1504, %v1490, 0
        %v1509 = vsel %vm1504, %v1500, 0
        %1511 = vmatprep.subr.bf16.mxu0 0
        %1512 = vmatpush1.bf16.xpose.msra.mxu0 %v1509
        %1513 = vmatprep.subr.bf16.mxu0 0
        %1514 = vmatpush1.bf16.xpose.msra.mxu0 0
        %1515 = vmatprep.subr.bf16.mxu0 0
        %1516 = vmatpush1.bf16.xpose.msra.mxu0 0
        %1517 = vmatprep.subr.bf16.mxu0 0
        %1518 = vmatpush1.bf16.xpose.msra.mxu0 0
        %1519 = vmatprep.subr.bf16.mxu0 0
        %1520 = vmatpush1.bf16.xpose.msra.mxu0 0
        %1521 = vmatprep.subr.bf16.mxu0 0
        %1522 = vmatpush1.bf16.xpose.msra.mxu0 0
        %1523 = vmatprep.subr.bf16.mxu0 0
        %1524 = vmatpush1.bf16.xpose.msra.mxu0 0
        %1525 = vmatprep.subr.bf16.mxu0 0
        %1526 = vmatpush1.bf16.xpose.msra.mxu0 0
        %1527 = vmatprep.subr.bf16.mxu0 0
        %1528 = vmatpush1.bf16.xpose.msra.mxu0 0
        %1529 = vmatprep.subr.bf16.mxu0 0
        %1530 = vmatpush1.bf16.xpose.msra.mxu0 0
        %1531 = vmatprep.subr.bf16.mxu0 0
        %1532 = vmatpush1.bf16.xpose.msra.mxu0 0
        %1533 = vmatprep.subr.bf16.mxu0 0
        %1534 = vmatpush1.bf16.xpose.msra.mxu0 0
        %1535 = vmatprep.subr.bf16.mxu0 0
        %1536 = vmatpush1.bf16.xpose.msra.mxu0 0
        %1537 = vmatprep.subr.bf16.mxu0 0
        %1538 = vmatpush1.bf16.xpose.msra.mxu0 0
        %1539 = vmatprep.subr.bf16.mxu0 0
        %1540 = vmatpush1.bf16.xpose.msra.mxu0 0
        %1541 = vmatprep.subr.bf16.mxu0 0
        %1542 = vmatpush1.bf16.xpose.msra.mxu0 0
        %1543 = vmatprep.mubr.bf16.mxu0 0
        %1544 = vmatmul.mubr.bf16.gmra.mrb[0].mxu0 %v1506
        %v1545 = vpop.f32.mrb[0].mxu0
        %v1546 = vadd.f32 0.0, %v1545
        %v1547 = vpop.f32.mrb[0].mxu0
        %v1548 = vpop.f32.mrb[0].mxu0
        %v1549 = vadd.f32 0.0, %v1548
        %v1550 = vpop.f32.mrb[0].mxu0
        %1551 = vdwg.mxu0
        %v1553 = vsel %vm1504, %v1493, 0
        %v1556 = vsel %vm1504, %v1501, 0
        %1558 = vmatprep.subr.bf16.mxu0 0
        %1559 = vmatpush1.bf16.xpose.msra.mxu0 %v1556
        %1560 = vmatprep.subr.bf16.mxu0 0
        %1561 = vmatpush1.bf16.xpose.msra.mxu0 0
        %1562 = vmatprep.subr.bf16.mxu0 0
        %1563 = vmatpush1.bf16.xpose.msra.mxu0 0
        %1564 = vmatprep.subr.bf16.mxu0 0
        %1565 = vmatpush1.bf16.xpose.msra.mxu0 0
        %1566 = vmatprep.subr.bf16.mxu0 0
        %1567 = vmatpush1.bf16.xpose.msra.mxu0 0
        %1568 = vmatprep.subr.bf16.mxu0 0
        %1569 = vmatpush1.bf16.xpose.msra.mxu0 0
        %1570 = vmatprep.subr.bf16.mxu0 0
        %1571 = vmatpush1.bf16.xpose.msra.mxu0 0
        %1572 = vmatprep.subr.bf16.mxu0 0
        %1573 = vmatpush1.bf16.xpose.msra.mxu0 0
        %1574 = vmatprep.subr.bf16.mxu0 0
        %1575 = vmatpush1.bf16.xpose.msra.mxu0 0
        %1576 = vmatprep.subr.bf16.mxu0 0
        %1577 = vmatpush1.bf16.xpose.msra.mxu0 0
        %1578 = vmatprep.subr.bf16.mxu0 0
        %1579 = vmatpush1.bf16.xpose.msra.mxu0 0
        %1580 = vmatprep.subr.bf16.mxu0 0
        %1581 = vmatpush1.bf16.xpose.msra.mxu0 0
        %1582 = vmatprep.subr.bf16.mxu0 0
        %1583 = vmatpush1.bf16.xpose.msra.mxu0 0
        %1584 = vmatprep.subr.bf16.mxu0 0
        %1585 = vmatpush1.bf16.xpose.msra.mxu0 0
        %1586 = vmatprep.subr.bf16.mxu0 0
        %1587 = vmatpush1.bf16.xpose.msra.mxu0 0
        %1588 = vmatprep.subr.bf16.mxu0 0
        %1589 = vmatpush1.bf16.xpose.msra.mxu0 0
        %1590 = vmatprep.mubr.bf16.mxu0 0
        %1591 = vmatmul.mubr.bf16.gmra.mrb[0].mxu0 %v1553
        %v1592 = vpop.f32.mrb[0].mxu0
        %v1593 = vadd.f32 0.0, %v1592
        %v1594 = vpop.f32.mrb[0].mxu0
        %v1595 = vpop.f32.mrb[0].mxu0
        %v1596 = vadd.f32 0.0, %v1595
        %v1597 = vpop.f32.mrb[0].mxu0
        %1598 = vdwg.mxu0
        %v1600 = vsel %vm1504, %v1496, 0
        %v1603 = vsel %vm1504, %v1502, 0
        %1605 = vmatprep.subr.bf16.mxu0 0
        %1606 = vmatpush1.bf16.xpose.msra.mxu0 %v1603
        %1607 = vmatprep.subr.bf16.mxu0 0
        %1608 = vmatpush1.bf16.xpose.msra.mxu0 0
        %1609 = vmatprep.subr.bf16.mxu0 0
        %1610 = vmatpush1.bf16.xpose.msra.mxu0 0
        %1611 = vmatprep.subr.bf16.mxu0 0
        %1612 = vmatpush1.bf16.xpose.msra.mxu0 0
        %1613 = vmatprep.subr.bf16.mxu0 0
        %1614 = vmatpush1.bf16.xpose.msra.mxu0 0
        %1615 = vmatprep.subr.bf16.mxu0 0
        %1616 = vmatpush1.bf16.xpose.msra.mxu0 0
        %1617 = vmatprep.subr.bf16.mxu0 0
        %1618 = vmatpush1.bf16.xpose.msra.mxu0 0
        %1619 = vmatprep.subr.bf16.mxu0 0
        %1620 = vmatpush1.bf16.xpose.msra.mxu0 0
        %1621 = vmatprep.subr.bf16.mxu0 0
        %1622 = vmatpush1.bf16.xpose.msra.mxu0 0
        %1623 = vmatprep.subr.bf16.mxu0 0
        %1624 = vmatpush1.bf16.xpose.msra.mxu0 0
        %1625 = vmatprep.subr.bf16.mxu0 0
        %1626 = vmatpush1.bf16.xpose.msra.mxu0 0
        %1627 = vmatprep.subr.bf16.mxu0 0
        %1628 = vmatpush1.bf16.xpose.msra.mxu0 0
        %1629 = vmatprep.subr.bf16.mxu0 0
        %1630 = vmatpush1.bf16.xpose.msra.mxu0 0
        %1631 = vmatprep.subr.bf16.mxu0 0
        %1632 = vmatpush1.bf16.xpose.msra.mxu0 0
        %1633 = vmatprep.subr.bf16.mxu0 0
        %1634 = vmatpush1.bf16.xpose.msra.mxu0 0
        %1635 = vmatprep.subr.bf16.mxu0 0
        %1636 = vmatpush1.bf16.xpose.msra.mxu0 0
        %1637 = vmatprep.mubr.bf16.mxu0 0
        %1638 = vmatmul.mubr.bf16.gmra.mrb[0].mxu0 %v1600
        %v1639 = vpop.f32.mrb[0].mxu0
        %v1640 = vadd.f32 0.0, %v1639
        %v1641 = vpop.f32.mrb[0].mxu0
        %v1642 = vpop.f32.mrb[0].mxu0
        %v1643 = vadd.f32 0.0, %v1642
        %v1644 = vpop.f32.mrb[0].mxu0
        %1645 = vdwg.mxu0
        %v1647 = vsel %vm1504, %v1499, 0
        %v1650 = vsel %vm1504, %v1503, 0
        %1652 = vmatprep.subr.bf16.mxu0 0
        %1653 = vmatpush1.bf16.xpose.msra.mxu0 %v1650
        %1654 = vmatprep.subr.bf16.mxu0 0
        %1655 = vmatpush1.bf16.xpose.msra.mxu0 0
        %1656 = vmatprep.subr.bf16.mxu0 0
        %1657 = vmatpush1.bf16.xpose.msra.mxu0 0
        %1658 = vmatprep.subr.bf16.mxu0 0
        %1659 = vmatpush1.bf16.xpose.msra.mxu0 0
        %1660 = vmatprep.subr.bf16.mxu0 0
        %1661 = vmatpush1.bf16.xpose.msra.mxu0 0
        %1662 = vmatprep.subr.bf16.mxu0 0
        %1663 = vmatpush1.bf16.xpose.msra.mxu0 0
        %1664 = vmatprep.subr.bf16.mxu0 0
        %1665 = vmatpush1.bf16.xpose.msra.mxu0 0
        %1666 = vmatprep.subr.bf16.mxu0 0
        %1667 = vmatpush1.bf16.xpose.msra.mxu0 0
        %1668 = vmatprep.subr.bf16.mxu0 0
        %1669 = vmatpush1.bf16.xpose.msra.mxu0 0
        %1670 = vmatprep.subr.bf16.mxu0 0
        %1671 = vmatpush1.bf16.xpose.msra.mxu0 0
        %1672 = vmatprep.subr.bf16.mxu0 0
        %1673 = vmatpush1.bf16.xpose.msra.mxu0 0
        %1674 = vmatprep.subr.bf16.mxu0 0
        %1675 = vmatpush1.bf16.xpose.msra.mxu0 0
        %1676 = vmatprep.subr.bf16.mxu0 0
        %1677 = vmatpush1.bf16.xpose.msra.mxu0 0
        %1678 = vmatprep.subr.bf16.mxu0 0
        %1679 = vmatpush1.bf16.xpose.msra.mxu0 0
        %1680 = vmatprep.subr.bf16.mxu0 0
        %1681 = vmatpush1.bf16.xpose.msra.mxu0 0
        %1682 = vmatprep.subr.bf16.mxu0 0
        %1683 = vmatpush1.bf16.xpose.msra.mxu0 0
        %1684 = vmatprep.mubr.bf16.mxu0 0
        %1685 = vmatmul.mubr.bf16.gmra.mrb[0].mxu0 %v1647
        %v1686 = vpop.f32.mrb[0].mxu0
        %v1687 = vadd.f32 0.0, %v1686
        %v1688 = vpop.f32.mrb[0].mxu0
        %v1689 = vpop.f32.mrb[0].mxu0
        %v1690 = vadd.f32 0.0, %v1689
        %v1691 = vpop.f32.mrb[0].mxu0
        %1692 = vdwg.mxu0
        %vm1693 = vcmask 130048
        %v1694 = vsel %vm1693, %v1546, -inf
        %1695 = vmax.xlane.f32.xlu0 %v1694
        %v1696 = vpop.xlane.xlu0 %1695
        %v1697 = vsel %vm1693, %v1549, -inf
        %1698 = vmax.xlane.f32.xlu0 %v1697
        %v1699 = vpop.xlane.xlu0 %1698
        %v1700 = vsel %vm1693, %v1593, -inf
        %1701 = vmax.xlane.f32.xlu0 %v1700
        %v1702 = vpop.xlane.xlu0 %1701
        %v1703 = vsel %vm1693, %v1596, -inf
        %1704 = vmax.xlane.f32.xlu0 %v1703
        %v1705 = vpop.xlane.xlu0 %1704
        %v1706 = vsel %vm1693, %v1640, -inf
        %1707 = vmax.xlane.f32.xlu0 %v1706
        %v1708 = vpop.xlane.xlu0 %1707
        %v1709 = vsel %vm1693, %v1643, -inf
        %1710 = vmax.xlane.f32.xlu0 %v1709
        %v1711 = vpop.xlane.xlu0 %1710
        %v1712 = vsel %vm1693, %v1687, -inf
        %1713 = vmax.xlane.f32.xlu0 %v1712
        %v1714 = vpop.xlane.xlu0 %1713
        %v1715 = vsel %vm1693, %v1690, -inf
        %1716 = vmax.xlane.f32.xlu0 %v1715
        %v1717 = vpop.xlane.xlu0 %1716
        %v1718 = vsub.f32 %v1546, %v1696
        %v1719 = vsub.f32 %v1549, %v1699
        %v1720 = vsub.f32 %v1593, %v1702
        %v1721 = vsub.f32 %v1596, %v1705
        %v1722 = vsub.f32 %v1640, %v1708
        %v1723 = vsub.f32 %v1643, %v1711
        %v1724 = vsub.f32 %v1687, %v1714
        %v1725 = vsub.f32 %v1690, %v1717
        %v1726 = vmul.f32 %v1718, 1.442695
        %v1727 = vpow.pop %v1726
        %v1728 = vmul.f32 %v1719, 1.442695
        %v1729 = vpow.pop %v1728
        %v1730 = vmul.f32 %v1720, 1.442695
        %v1731 = vpow.pop %v1730
        %v1732 = vmul.f32 %v1721, 1.442695
        %v1733 = vpow.pop %v1732
        %v1734 = vmul.f32 %v1722, 1.442695
        %v1735 = vpow.pop %v1734
        %v1736 = vmul.f32 %v1723, 1.442695
        %v1737 = vpow.pop %v1736
        %v1738 = vmul.f32 %v1724, 1.442695
        %v1739 = vpow.pop %v1738
        %v1740 = vmul.f32 %v1725, 1.442695
        %v1741 = vpow.pop %v1740
        %v1742 = vsel %vm1693, %v1727, 0.0
        %1743 = vadd.xlane.f32.xlu0 %v1742
        %v1744 = vpop.xlane.xlu0 %1743
        %v1745 = vsel %vm1693, %v1729, 0.0
        %1746 = vadd.xlane.f32.xlu0 %v1745
        %v1747 = vpop.xlane.xlu0 %1746
        %v1748 = vsel %vm1693, %v1731, 0.0
        %1749 = vadd.xlane.f32.xlu0 %v1748
        %v1750 = vpop.xlane.xlu0 %1749
        %v1751 = vsel %vm1693, %v1733, 0.0
        %1752 = vadd.xlane.f32.xlu0 %v1751
        %v1753 = vpop.xlane.xlu0 %1752
        %v1754 = vsel %vm1693, %v1735, 0.0
        %1755 = vadd.xlane.f32.xlu0 %v1754
        %v1756 = vpop.xlane.xlu0 %1755
        %v1757 = vsel %vm1693, %v1737, 0.0
        %1758 = vadd.xlane.f32.xlu0 %v1757
        %v1759 = vpop.xlane.xlu0 %1758
        %v1760 = vsel %vm1693, %v1739, 0.0
        %1761 = vadd.xlane.f32.xlu0 %v1760
        %v1762 = vpop.xlane.xlu0 %1761
        %v1763 = vsel %vm1693, %v1741, 0.0
        %1764 = vadd.xlane.f32.xlu0 %v1763
        %v1765 = vpop.xlane.xlu0 %1764
        %v1766 = vrcp.pop %v1744
        %v1767 = vrcp.pop %v1747
        %v1768 = vrcp.pop %v1750
        %v1769 = vrcp.pop %v1753
        %v1770 = vrcp.pop %v1756
        %v1771 = vrcp.pop %v1759
        %v1772 = vrcp.pop %v1762
        %v1773 = vrcp.pop %v1765
        %v1774 = vmul.f32 %v1727, %v1766
        %v1775 = vmul.f32 %v1729, %v1767
        %v1776 = vmul.f32 %v1731, %v1768
        %v1777 = vmul.f32 %v1733, %v1769
        %v1778 = vmul.f32 %v1735, %v1770
        %v1779 = vmul.f32 %v1737, %v1771
        %v1780 = vmul.f32 %v1739, %v1772
        %v1781 = vmul.f32 %v1741, %v1773
        %v1782 = vpack.c.bf16 %v1775, %v1774
        %v1783 = vpack.c.bf16 %v1777, %v1776
        %v1784 = vpack.c.bf16 %v1779, %v1778
        %v1785 = vpack.c.bf16 %v1781, %v1780
        %v1786 = vld [vmem:[#allocation3] sm:$0xff]
        %v1787 = vld [vmem:[#allocation3 + $0x8] sm:$0xff]
        %v1788 = vld [vmem:[#allocation3 + $0x10] sm:$0xff]
        %v1789 = vld [vmem:[#allocation3 + $0x18] sm:$0xff]
        %v1791 = vsel %vm1693, %v1782, 0
        %1793 = vmatprep.subr.bf16.mxu0 0
        %1794 = vmatpush1.bf16.msra.mxu0 %v1786
        %1795 = vmatprep.subr.bf16.mxu0 0
        %1796 = vmatpush1.bf16.msra.mxu0 0
        %1797 = vmatprep.subr.bf16.mxu0 0
        %1798 = vmatpush1.bf16.msra.mxu0 0
        %1799 = vmatprep.subr.bf16.mxu0 0
        %1800 = vmatpush1.bf16.msra.mxu0 0
        %1801 = vmatprep.subr.bf16.mxu0 0
        %1802 = vmatpush1.bf16.msra.mxu0 0
        %1803 = vmatprep.subr.bf16.mxu0 0
        %1804 = vmatpush1.bf16.msra.mxu0 0
        %1805 = vmatprep.subr.bf16.mxu0 0
        %1806 = vmatpush1.bf16.msra.mxu0 0
        %1807 = vmatprep.subr.bf16.mxu0 0
        %1808 = vmatpush1.bf16.msra.mxu0 0
        %1809 = vmatprep.subr.bf16.mxu0 0
        %1810 = vmatpush1.bf16.msra.mxu0 0
        %1811 = vmatprep.subr.bf16.mxu0 0
        %1812 = vmatpush1.bf16.msra.mxu0 0
        %1813 = vmatprep.subr.bf16.mxu0 0
        %1814 = vmatpush1.bf16.msra.mxu0 0
        %1815 = vmatprep.subr.bf16.mxu0 0
        %1816 = vmatpush1.bf16.msra.mxu0 0
        %1817 = vmatprep.subr.bf16.mxu0 0
        %1818 = vmatpush1.bf16.msra.mxu0 0
        %1819 = vmatprep.subr.bf16.mxu0 0
        %1820 = vmatpush1.bf16.msra.mxu0 0
        %1821 = vmatprep.subr.bf16.mxu0 0
        %1822 = vmatpush1.bf16.msra.mxu0 0
        %1823 = vmatprep.subr.bf16.mxu0 0
        %1824 = vmatpush1.bf16.msra.mxu0 0
        %1825 = vmatprep.mubr.bf16.mxu0 0
        %1826 = vmatmul.mubr.bf16.gmra.mrb[0].mxu0 %v1791
        %v1827 = vpop.f32.mrb[0].mxu0
        %v1828 = vadd.f32 0.0, %v1827
        %v1829 = vpop.f32.mrb[0].mxu0
        %v1830 = vpop.f32.mrb[0].mxu0
        %v1831 = vadd.f32 0.0, %v1830
        %v1832 = vpop.f32.mrb[0].mxu0
        %1833 = vdwg.mxu0
        %v1835 = vsel %vm1693, %v1783, 0
        %1837 = vmatprep.subr.bf16.mxu0 0
        %1838 = vmatpush1.bf16.msra.mxu0 %v1787
        %1839 = vmatprep.subr.bf16.mxu0 0
        %1840 = vmatpush1.bf16.msra.mxu0 0
        %1841 = vmatprep.subr.bf16.mxu0 0
        %1842 = vmatpush1.bf16.msra.mxu0 0
        %1843 = vmatprep.subr.bf16.mxu0 0
        %1844 = vmatpush1.bf16.msra.mxu0 0
        %1845 = vmatprep.subr.bf16.mxu0 0
        %1846 = vmatpush1.bf16.msra.mxu0 0
        %1847 = vmatprep.subr.bf16.mxu0 0
        %1848 = vmatpush1.bf16.msra.mxu0 0
        %1849 = vmatprep.subr.bf16.mxu0 0
        %1850 = vmatpush1.bf16.msra.mxu0 0
        %1851 = vmatprep.subr.bf16.mxu0 0
        %1852 = vmatpush1.bf16.msra.mxu0 0
        %1853 = vmatprep.subr.bf16.mxu0 0
        %1854 = vmatpush1.bf16.msra.mxu0 0
        %1855 = vmatprep.subr.bf16.mxu0 0
        %1856 = vmatpush1.bf16.msra.mxu0 0
        %1857 = vmatprep.subr.bf16.mxu0 0
        %1858 = vmatpush1.bf16.msra.mxu0 0
        %1859 = vmatprep.subr.bf16.mxu0 0
        %1860 = vmatpush1.bf16.msra.mxu0 0
        %1861 = vmatprep.subr.bf16.mxu0 0
        %1862 = vmatpush1.bf16.msra.mxu0 0
        %1863 = vmatprep.subr.bf16.mxu0 0
        %1864 = vmatpush1.bf16.msra.mxu0 0
        %1865 = vmatprep.subr.bf16.mxu0 0
        %1866 = vmatpush1.bf16.msra.mxu0 0
        %1867 = vmatprep.subr.bf16.mxu0 0
        %1868 = vmatpush1.bf16.msra.mxu0 0
        %1869 = vmatprep.mubr.bf16.mxu0 0
        %1870 = vmatmul.mubr.bf16.gmra.mrb[0].mxu0 %v1835
        %v1871 = vpop.f32.mrb[0].mxu0
        %v1872 = vadd.f32 0.0, %v1871
        %v1873 = vpop.f32.mrb[0].mxu0
        %v1874 = vpop.f32.mrb[0].mxu0
        %v1875 = vadd.f32 0.0, %v1874
        %v1876 = vpop.f32.mrb[0].mxu0
        %1877 = vdwg.mxu0
        %v1879 = vsel %vm1693, %v1784, 0
        %1881 = vmatprep.subr.bf16.mxu0 0
        %1882 = vmatpush1.bf16.msra.mxu0 %v1788
        %1883 = vmatprep.subr.bf16.mxu0 0
        %1884 = vmatpush1.bf16.msra.mxu0 0
        %1885 = vmatprep.subr.bf16.mxu0 0
        %1886 = vmatpush1.bf16.msra.mxu0 0
        %1887 = vmatprep.subr.bf16.mxu0 0
        %1888 = vmatpush1.bf16.msra.mxu0 0
        %1889 = vmatprep.subr.bf16.mxu0 0
        %1890 = vmatpush1.bf16.msra.mxu0 0
        %1891 = vmatprep.subr.bf16.mxu0 0
        %1892 = vmatpush1.bf16.msra.mxu0 0
        %1893 = vmatprep.subr.bf16.mxu0 0
        %1894 = vmatpush1.bf16.msra.mxu0 0
        %1895 = vmatprep.subr.bf16.mxu0 0
        %1896 = vmatpush1.bf16.msra.mxu0 0
        %1897 = vmatprep.subr.bf16.mxu0 0
        %1898 = vmatpush1.bf16.msra.mxu0 0
        %1899 = vmatprep.subr.bf16.mxu0 0
        %1900 = vmatpush1.bf16.msra.mxu0 0
        %1901 = vmatprep.subr.bf16.mxu0 0
        %1902 = vmatpush1.bf16.msra.mxu0 0
        %1903 = vmatprep.subr.bf16.mxu0 0
        %1904 = vmatpush1.bf16.msra.mxu0 0
        %1905 = vmatprep.subr.bf16.mxu0 0
        %1906 = vmatpush1.bf16.msra.mxu0 0
        %1907 = vmatprep.subr.bf16.mxu0 0
        %1908 = vmatpush1.bf16.msra.mxu0 0
        %1909 = vmatprep.subr.bf16.mxu0 0
        %1910 = vmatpush1.bf16.msra.mxu0 0
        %1911 = vmatprep.subr.bf16.mxu0 0
        %1912 = vmatpush1.bf16.msra.mxu0 0
        %1913 = vmatprep.mubr.bf16.mxu0 0
        %1914 = vmatmul.mubr.bf16.gmra.mrb[0].mxu0 %v1879
        %v1915 = vpop.f32.mrb[0].mxu0
        %v1916 = vadd.f32 0.0, %v1915
        %v1917 = vpop.f32.mrb[0].mxu0
        %v1918 = vpop.f32.mrb[0].mxu0
        %v1919 = vadd.f32 0.0, %v1918
        %v1920 = vpop.f32.mrb[0].mxu0
        %1921 = vdwg.mxu0
        %v1923 = vsel %vm1693, %v1785, 0
        %1925 = vmatprep.subr.bf16.mxu0 0
        %1926 = vmatpush1.bf16.msra.mxu0 %v1789
        %1927 = vmatprep.subr.bf16.mxu0 0
        %1928 = vmatpush1.bf16.msra.mxu0 0
        %1929 = vmatprep.subr.bf16.mxu0 0
        %1930 = vmatpush1.bf16.msra.mxu0 0
        %1931 = vmatprep.subr.bf16.mxu0 0
        %1932 = vmatpush1.bf16.msra.mxu0 0
        %1933 = vmatprep.subr.bf16.mxu0 0
        %1934 = vmatpush1.bf16.msra.mxu0 0
        %1935 = vmatprep.subr.bf16.mxu0 0
        %1936 = vmatpush1.bf16.msra.mxu0 0
        %1937 = vmatprep.subr.bf16.mxu0 0
        %1938 = vmatpush1.bf16.msra.mxu0 0
        %1939 = vmatprep.subr.bf16.mxu0 0
        %1940 = vmatpush1.bf16.msra.mxu0 0
        %1941 = vmatprep.subr.bf16.mxu0 0
        %1942 = vmatpush1.bf16.msra.mxu0 0
        %1943 = vmatprep.subr.bf16.mxu0 0
        %1944 = vmatpush1.bf16.msra.mxu0 0
        %1945 = vmatprep.subr.bf16.mxu0 0
        %1946 = vmatpush1.bf16.msra.mxu0 0
        %1947 = vmatprep.subr.bf16.mxu0 0
        %1948 = vmatpush1.bf16.msra.mxu0 0
        %1949 = vmatprep.subr.bf16.mxu0 0
        %1950 = vmatpush1.bf16.msra.mxu0 0
        %1951 = vmatprep.subr.bf16.mxu0 0
        %1952 = vmatpush1.bf16.msra.mxu0 0
        %1953 = vmatprep.subr.bf16.mxu0 0
        %1954 = vmatpush1.bf16.msra.mxu0 0
        %1955 = vmatprep.subr.bf16.mxu0 0
        %1956 = vmatpush1.bf16.msra.mxu0 0
        %1957 = vmatprep.mubr.bf16.mxu0 0
        %1958 = vmatmul.mubr.bf16.gmra.mrb[0].mxu0 %v1923
        %v1959 = vpop.f32.mrb[0].mxu0
        %v1960 = vadd.f32 0.0, %v1959
        %v1961 = vpop.f32.mrb[0].mxu0
        %v1962 = vpop.f32.mrb[0].mxu0
        %v1963 = vadd.f32 0.0, %v1962
        %v1964 = vpop.f32.mrb[0].mxu0
        %1965 = vdwg.mxu0
        %v1966 = vcombine.low %v1828, %v1916
        %v1967 = vcombine.high %v1828, %v1916
        %v1969 = vunpack.c.l.s4 1983009808
        %v1970 = vunpack.c.0.s8 %v1969
        %v1971 = vlaneseq
        %v1972 = vshrl.u32 %v1971, 7
        %v1973 = vsub.s32 %v1970, %v1972
        %v1974 = vrot.slane %v1966, %v1973
        %v1976 = vunpack.c.l.s4 1983009808
        %v1977 = vunpack.c.0.s8 %v1976
        %v1978 = vlaneseq
        %v1979 = vshrl.u32 %v1978, 7
        %v1980 = vsub.s32 %v1977, %v1979
        %v1981 = vrot.slane %v1967, %v1980
        %v1982 = vcombine.low %v1872, %v1960
        %v1983 = vcombine.high %v1872, %v1960
        %v1985 = vunpack.c.l.s4 1983009808
        %v1986 = vunpack.c.0.s8 %v1985
        %v1987 = vlaneseq
        %v1988 = vshrl.u32 %v1987, 7
        %v1989 = vsub.s32 %v1986, %v1988
        %v1990 = vrot.slane %v1982, %v1989
        %v1992 = vunpack.c.l.s4 1983009808
        %v1993 = vunpack.c.0.s8 %v1992
        %v1994 = vlaneseq
        %v1995 = vshrl.u32 %v1994, 7
        %v1996 = vsub.s32 %v1993, %v1995
        %v1997 = vrot.slane %v1983, %v1996
        %v1998 = vcombine.low %v1974, %v1990
        %v1999 = vcombine.high %v1974, %v1990
        %v2001 = vunpack.c.l.s4 1934713408
        %v2002 = vunpack.c.0.s8 %v2001
        %v2003 = vlaneseq
        %v2004 = vshrl.u32 %v2003, 7
        %v2005 = vsub.s32 %v2002, %v2004
        %v2006 = vrot.slane %v1998, %v2005
        %v2008 = vunpack.c.l.s4 1934713408
        %v2009 = vunpack.c.0.s8 %v2008
        %v2010 = vlaneseq
        %v2011 = vshrl.u32 %v2010, 7
        %v2012 = vsub.s32 %v2009, %v2011
        %v2013 = vrot.slane %v1999, %v2012
        %v2014 = vcombine.low %v1981, %v1997
        %v2015 = vcombine.high %v1981, %v1997
        %v2017 = vunpack.c.l.s4 1934713408
        %v2018 = vunpack.c.0.s8 %v2017
        %v2019 = vlaneseq
        %v2020 = vshrl.u32 %v2019, 7
        %v2021 = vsub.s32 %v2018, %v2020
        %v2022 = vrot.slane %v2014, %v2021
        %v2024 = vunpack.c.l.s4 1934713408
        %v2025 = vunpack.c.0.s8 %v2024
        %v2026 = vlaneseq
        %v2027 = vshrl.u32 %v2026, 7
        %v2028 = vsub.s32 %v2025, %v2027
        %v2029 = vrot.slane %v2015, %v2028
        %v2030 = vcombine.high %v2006, 0.0
        %v2031 = vcombine.high %v2013, 0.0
        %v2032 = vcombine.high %v2022, 0.0
        %v2033 = vcombine.high %v2029, 0.0
        %v2034 = vcombine.low %v1831, %v1919
        %v2035 = vcombine.high %v1831, %v1919
        %v2037 = vunpack.c.l.s4 1983009808
        %v2038 = vunpack.c.0.s8 %v2037
        %v2039 = vlaneseq
        %v2040 = vshrl.u32 %v2039, 7
        %v2041 = vsub.s32 %v2038, %v2040
        %v2042 = vrot.slane %v2034, %v2041
        %v2044 = vunpack.c.l.s4 1983009808
        %v2045 = vunpack.c.0.s8 %v2044
        %v2046 = vlaneseq
        %v2047 = vshrl.u32 %v2046, 7
        %v2048 = vsub.s32 %v2045, %v2047
        %v2049 = vrot.slane %v2035, %v2048
        %v2050 = vcombine.low %v1875, %v1963
        %v2051 = vcombine.high %v1875, %v1963
        %v2053 = vunpack.c.l.s4 1983009808
        %v2054 = vunpack.c.0.s8 %v2053
        %v2055 = vlaneseq
        %v2056 = vshrl.u32 %v2055, 7
        %v2057 = vsub.s32 %v2054, %v2056
        %v2058 = vrot.slane %v2050, %v2057
        %v2060 = vunpack.c.l.s4 1983009808
        %v2061 = vunpack.c.0.s8 %v2060
        %v2062 = vlaneseq
        %v2063 = vshrl.u32 %v2062, 7
        %v2064 = vsub.s32 %v2061, %v2063
        %v2065 = vrot.slane %v2051, %v2064
        %v2066 = vcombine.low %v2042, %v2058
        %v2067 = vcombine.high %v2042, %v2058
        %v2069 = vunpack.c.l.s4 1934713408
        %v2070 = vunpack.c.0.s8 %v2069
        %v2071 = vlaneseq
        %v2072 = vshrl.u32 %v2071, 7
        %v2073 = vsub.s32 %v2070, %v2072
        %v2074 = vrot.slane %v2066, %v2073
        %v2076 = vunpack.c.l.s4 1934713408
        %v2077 = vunpack.c.0.s8 %v2076
        %v2078 = vlaneseq
        %v2079 = vshrl.u32 %v2078, 7
        %v2080 = vsub.s32 %v2077, %v2079
        %v2081 = vrot.slane %v2067, %v2080
        %v2082 = vcombine.low %v2049, %v2065
        %v2083 = vcombine.high %v2049, %v2065
        %v2085 = vunpack.c.l.s4 1934713408
        %v2086 = vunpack.c.0.s8 %v2085
        %v2087 = vlaneseq
        %v2088 = vshrl.u32 %v2087, 7
        %v2089 = vsub.s32 %v2086, %v2088
        %v2090 = vrot.slane %v2082, %v2089
        %v2092 = vunpack.c.l.s4 1934713408
        %v2093 = vunpack.c.0.s8 %v2092
        %v2094 = vlaneseq
        %v2095 = vshrl.u32 %v2094, 7
        %v2096 = vsub.s32 %v2093, %v2095
        %v2097 = vrot.slane %v2083, %v2096
        %v2098 = vcombine.high %v2074, 0.0
        %v2099 = vcombine.high %v2081, 0.0
        %v2100 = vcombine.high %v2090, 0.0
        %v2101 = vcombine.high %v2097, 0.0
        %v2102 = vcombine.low %v2006, %v2013
        %v2104 = vunpack.c.l.s4 1983009808
        %v2105 = vunpack.c.0.s8 %v2104
        %v2106 = vlaneseq
        %v2107 = vshrl.u32 %v2106, 7
        %v2108 = vsub.s32 %v2105, %v2107
        %v2109 = vrot.slane %v2102, %v2108
        %v2110 = vcombine.low %v2030, %v2031
        %v2112 = vunpack.c.l.s4 1983009808
        %v2113 = vunpack.c.0.s8 %v2112
        %v2114 = vlaneseq
        %v2115 = vshrl.u32 %v2114, 7
        %v2116 = vsub.s32 %v2113, %v2115
        %v2117 = vrot.slane %v2110, %v2116
        %v2118 = vcombine.low %v2022, %v2029
        %v2120 = vunpack.c.l.s4 1983009808
        %v2121 = vunpack.c.0.s8 %v2120
        %v2122 = vlaneseq
        %v2123 = vshrl.u32 %v2122, 7
        %v2124 = vsub.s32 %v2121, %v2123
        %v2125 = vrot.slane %v2118, %v2124
        %v2126 = vcombine.low %v2032, %v2033
        %v2128 = vunpack.c.l.s4 1983009808
        %v2129 = vunpack.c.0.s8 %v2128
        %v2130 = vlaneseq
        %v2131 = vshrl.u32 %v2130, 7
        %v2132 = vsub.s32 %v2129, %v2131
        %v2133 = vrot.slane %v2126, %v2132
        %v2134 = vcombine.low %v2109, %v2117
        %v2135 = vcombine.high %v2109, %v2117
        %v2137 = vunpack.c.l.s4 1934713408
        %v2138 = vunpack.c.0.s8 %v2137
        %v2139 = vlaneseq
        %v2140 = vshrl.u32 %v2139, 7
        %v2141 = vsub.s32 %v2138, %v2140
        %v2142 = vrot.slane %v2134, %v2141
        %v2144 = vunpack.c.l.s4 1934713408
        %v2145 = vunpack.c.0.s8 %v2144
        %v2146 = vlaneseq
        %v2147 = vshrl.u32 %v2146, 7
        %v2148 = vsub.s32 %v2145, %v2147
        %v2149 = vrot.slane %v2135, %v2148
        %v2150 = vcombine.low %v2125, %v2133
        %v2151 = vcombine.high %v2125, %v2133
        %v2153 = vunpack.c.l.s4 1934713408
        %v2154 = vunpack.c.0.s8 %v2153
        %v2155 = vlaneseq
        %v2156 = vshrl.u32 %v2155, 7
        %v2157 = vsub.s32 %v2154, %v2156
        %v2158 = vrot.slane %v2150, %v2157
        %v2160 = vunpack.c.l.s4 1934713408
        %v2161 = vunpack.c.0.s8 %v2160
        %v2162 = vlaneseq
        %v2163 = vshrl.u32 %v2162, 7
        %v2164 = vsub.s32 %v2161, %v2163
        %v2165 = vrot.slane %v2151, %v2164
        %v2166 = vcombine.low %v2142, %v2158
        %v2167 = vcombine.high %v2142, %v2158
        %v2168 = vcombine.low %v2149, %v2165
        %v2169 = vcombine.high %v2149, %v2165
        %v2170 = vcombine.low %v2074, %v2081
        %v2172 = vunpack.c.l.s4 1983009808
        %v2173 = vunpack.c.0.s8 %v2172
        %v2174 = vlaneseq
        %v2175 = vshrl.u32 %v2174, 7
        %v2176 = vsub.s32 %v2173, %v2175
        %v2177 = vrot.slane %v2170, %v2176
        %v2178 = vcombine.low %v2098, %v2099
        %v2180 = vunpack.c.l.s4 1983009808
        %v2181 = vunpack.c.0.s8 %v2180
        %v2182 = vlaneseq
        %v2183 = vshrl.u32 %v2182, 7
        %v2184 = vsub.s32 %v2181, %v2183
        %v2185 = vrot.slane %v2178, %v2184
        %v2186 = vcombine.low %v2090, %v2097
        %v2188 = vunpack.c.l.s4 1983009808
        %v2189 = vunpack.c.0.s8 %v2188
        %v2190 = vlaneseq
        %v2191 = vshrl.u32 %v2190, 7
        %v2192 = vsub.s32 %v2189, %v2191
        %v2193 = vrot.slane %v2186, %v2192
        %v2194 = vcombine.low %v2100, %v2101
        %v2196 = vunpack.c.l.s4 1983009808
        %v2197 = vunpack.c.0.s8 %v2196
        %v2198 = vlaneseq
        %v2199 = vshrl.u32 %v2198, 7
        %v2200 = vsub.s32 %v2197, %v2199
        %v2201 = vrot.slane %v2194, %v2200
        %v2202 = vcombine.low %v2177, %v2185
        %v2203 = vcombine.high %v2177, %v2185
        %v2205 = vunpack.c.l.s4 1934713408
        %v2206 = vunpack.c.0.s8 %v2205
        %v2207 = vlaneseq
        %v2208 = vshrl.u32 %v2207, 7
        %v2209 = vsub.s32 %v2206, %v2208
        %v2210 = vrot.slane %v2202, %v2209
        %v2212 = vunpack.c.l.s4 1934713408
        %v2213 = vunpack.c.0.s8 %v2212
        %v2214 = vlaneseq
        %v2215 = vshrl.u32 %v2214, 7
        %v2216 = vsub.s32 %v2213, %v2215
        %v2217 = vrot.slane %v2203, %v2216
        %v2218 = vcombine.low %v2193, %v2201
        %v2219 = vcombine.high %v2193, %v2201
        %v2221 = vunpack.c.l.s4 1934713408
        %v2222 = vunpack.c.0.s8 %v2221
        %v2223 = vlaneseq
        %v2224 = vshrl.u32 %v2223, 7
        %v2225 = vsub.s32 %v2222, %v2224
        %v2226 = vrot.slane %v2218, %v2225
        %v2228 = vunpack.c.l.s4 1934713408
        %v2229 = vunpack.c.0.s8 %v2228
        %v2230 = vlaneseq
        %v2231 = vshrl.u32 %v2230, 7
        %v2232 = vsub.s32 %v2229, %v2231
        %v2233 = vrot.slane %v2219, %v2232
        %v2234 = vcombine.low %v2210, %v2226
        %v2235 = vcombine.high %v2210, %v2226
        %v2236 = vcombine.low %v2217, %v2233
        %v2237 = vcombine.high %v2217, %v2233
        %2240 = vrot.lane.b32.xlu0 %v2167, 32
        %v2241 = vpop.permute.xlu0 %2240
        %2242 = vrot.lane.b32.xlu0 %v2235, 32
        %v2243 = vpop.permute.xlu0 %2242
        %2248 = vrot.lane.b32.xlu0 %v2168, 64
        %v2249 = vpop.permute.xlu0 %2248
        %2250 = vrot.lane.b32.xlu0 %v2236, 64
        %v2251 = vpop.permute.xlu0 %2250
        %2256 = vrot.lane.b32.xlu0 %v2169, 96
        %v2257 = vpop.permute.xlu0 %2256
        %2258 = vrot.lane.b32.xlu0 %v2237, 96
        %v2259 = vpop.permute.xlu0 %2258
        %v2262 = vsel %vm1504, %v2166, %v2241
        %v2263 = vsel %vm1504, %v2234, %v2243
        %vm2264 = vcmask 523264
        %v2265 = vsel %vm2264, %v2262, %v2249
        %v2266 = vsel %vm2264, %v2263, %v2251
        %vm2267 = vcmask 785408
        %v2268 = vsel %vm2267, %v2265, %v2257
        %v2269 = vsel %vm2267, %v2266, %v2259
        %v2270 = vpack.c.bf16 %v2269, %v2268
        %v2271 = vld [vmem:[#allocation10] sm:$0xf]
        %v2272 = vld [vmem:[#allocation10 + $0x4] sm:$0xf]
        %v2273 = vld [vmem:[#allocation10 + $0x8] sm:$0xf]
        %v2274 = vld [vmem:[#allocation10 + $0xc] sm:$0xf]
        %v2275 = vld [vmem:[#allocation10 + $0x10] sm:$0xf]
        %v2276 = vld [vmem:[#allocation10 + $0x14] sm:$0xf]
        %v2277 = vld [vmem:[#allocation10 + $0x18] sm:$0xf]
        %v2278 = vld [vmem:[#allocation10 + $0x1c] sm:$0xf]
        %v2279 = vld [vmem:[#allocation10 + $0x20] sm:$0xf]
        %v2280 = vld [vmem:[#allocation10 + $0x24] sm:$0xf]
        %v2281 = vld [vmem:[#allocation10 + $0x28] sm:$0xf]
        %v2282 = vld [vmem:[#allocation10 + $0x2c] sm:$0xf]
        %v2283 = vld [vmem:[#allocation10 + $0x30] sm:$0xf]
        %v2284 = vld [vmem:[#allocation10 + $0x34] sm:$0xf]
        %v2285 = vld [vmem:[#allocation10 + $0x38] sm:$0xf]
        %v2286 = vld [vmem:[#allocation10 + $0x3c] sm:$0xf]
        %v2287 = vld [vmem:[%s6] sm:$0x1]
        %v2289 = vlaneseq
        %v2290 = vshrl.u32 %v2289, 7
        %v2291 = vsub.s32 0, %v2290
        %v2292 = vrot.slane %v2287, %v2291
        %v2310 = vunpack.c.l.b16 %v2271
        %v2311 = vunpack.c.l.b16 %v2272
        %v2312 = vunpack.c.l.b16 %v2273
        %v2313 = vunpack.c.l.b16 %v2274
        %v2314 = vunpack.c.l.b16 %v2275
        %v2315 = vunpack.c.l.b16 %v2276
        %v2316 = vunpack.c.l.b16 %v2277
        %v2317 = vunpack.c.l.b16 %v2278
        %v2318 = vunpack.c.l.b16 %v2279
        %v2319 = vunpack.c.l.b16 %v2280
        %v2320 = vunpack.c.l.b16 %v2281
        %v2321 = vunpack.c.l.b16 %v2282
        %v2322 = vunpack.c.l.b16 %v2283
        %v2323 = vunpack.c.l.b16 %v2284
        %v2324 = vunpack.c.l.b16 %v2285
        %v2325 = vunpack.c.l.b16 %v2286
        %v2326 = vpack.c.b16 %v2311, %v2310
        %v2327 = vpack.c.b16 %v2313, %v2312
        %v2328 = vpack.c.b16 %v2315, %v2314
        %v2329 = vpack.c.b16 %v2317, %v2316
        %v2330 = vpack.c.b16 %v2319, %v2318
        %v2331 = vpack.c.b16 %v2321, %v2320
        %v2332 = vpack.c.b16 %v2323, %v2322
        %v2333 = vpack.c.b16 %v2325, %v2324
        %2342 = vmatprep.subr.bf16.mxu0 0
        %2343 = vmatpush1.bf16.msra.mxu0 %v2326
        %2344 = vmatprep.subr.bf16.mxu0 0
        %2345 = vmatpush1.bf16.msra.mxu0 %v2327
        %2346 = vmatprep.subr.bf16.mxu0 0
        %2347 = vmatpush1.bf16.msra.mxu0 %v2328
        %2348 = vmatprep.subr.bf16.mxu0 0
        %2349 = vmatpush1.bf16.msra.mxu0 %v2329
        %2350 = vmatprep.subr.bf16.mxu0 0
        %2351 = vmatpush1.bf16.msra.mxu0 %v2330
        %2352 = vmatprep.subr.bf16.mxu0 0
        %2353 = vmatpush1.bf16.msra.mxu0 %v2331
        %2354 = vmatprep.subr.bf16.mxu0 0
        %2355 = vmatpush1.bf16.msra.mxu0 %v2332
        %2356 = vmatprep.subr.bf16.mxu0 0
        %2357 = vmatpush1.bf16.msra.mxu0 %v2333
        %2358 = vmatprep.subr.bf16.mxu0 0
        %2359 = vmatpush1.bf16.msra.mxu0 0
        %2360 = vmatprep.subr.bf16.mxu0 0
        %2361 = vmatpush1.bf16.msra.mxu0 0
        %2362 = vmatprep.subr.bf16.mxu0 0
        %2363 = vmatpush1.bf16.msra.mxu0 0
        %2364 = vmatprep.subr.bf16.mxu0 0
        %2365 = vmatpush1.bf16.msra.mxu0 0
        %2366 = vmatprep.subr.bf16.mxu0 0
        %2367 = vmatpush1.bf16.msra.mxu0 0
        %2368 = vmatprep.subr.bf16.mxu0 0
        %2369 = vmatpush1.bf16.msra.mxu0 0
        %2370 = vmatprep.subr.bf16.mxu0 0
        %2371 = vmatpush1.bf16.msra.mxu0 0
        %2372 = vmatprep.subr.bf16.mxu0 0
        %2373 = vmatpush1.bf16.msra.mxu0 0
        %2374 = vmatprep.mubr.bf16.mxu0 0
        %2375 = vmatmul.mubr.bf16.gmra.mrb[0].mxu0 %v2270
        %v2376 = vpop.f32.mrb[0].mxu0
        %v2377 = vadd.f32 %v2292, %v2376
        %v2378 = vpop.f32.mrb[0].mxu0
        %v2379 = vpop.f32.mrb[0].mxu0
        %v2380 = vadd.f32 %v2292, %v2379
        %v2381 = vpop.f32.mrb[0].mxu0
        %2382 = vdwg.mxu0
        %v2383 = vadd.f32 %v2377, %v1111
        %v2384 = vadd.f32 %v2380, %v1112
        %v2385 = vld [vmem:[%s7] sm:$0x1]
        %v2386 = vld [vmem:[%s8] sm:$0x1]
        %2387 = vadd.xlane.f32.xlu0 %v2383
        %v2388 = vpop.xlane.xlu0 %2387
        %2389 = vadd.xlane.f32.xlu0 %v2384
        %v2390 = vpop.xlane.xlu0 %2389
        %v2391 = vrcp.pop 128.0
        %v2392 = vmul.f32 %v2388, %v2391
        %v2393 = vmul.f32 %v2390, %v2391
        %v2394 = vsub.f32 %v2383, %v2392
        %v2395 = vsub.f32 %v2384, %v2393
        %v2396 = vmul.f32 %v2394, %v2394
        %v2397 = vmul.f32 %v2395, %v2395
        %2398 = vadd.xlane.f32.xlu0 %v2396
        %v2399 = vpop.xlane.xlu0 %2398
        %2400 = vadd.xlane.f32.xlu0 %v2397
        %v2401 = vpop.xlane.xlu0 %2400
        %v2402 = vmul.f32 %v2399, %v2391
        %v2403 = vmul.f32 %v2401, %v2391
        %v2404 = vadd.f32 %v2402, 1e-12
        %v2405 = vadd.f32 %v2403, 1e-12
        %v2406 = vrsqrt.pop %v2404
        %v2407 = vrsqrt.pop %v2405
        %v2408 = vmul.f32 %v2394, %v2406
        %v2409 = vmul.f32 %v2395, %v2407
        %v2411 = vlaneseq
        %v2412 = vshrl.u32 %v2411, 7
        %v2413 = vsub.s32 0, %v2412
        %v2414 = vrot.slane %v2385, %v2413
        %v2416 = vmul.f32 %v2408, %v2414
        %v2417 = vmul.f32 %v2409, %v2414
        %v2419 = vlaneseq
        %v2420 = vshrl.u32 %v2419, 7
        %v2421 = vsub.s32 0, %v2420
        %v2422 = vrot.slane %v2386, %v2421
        %v2424 = vadd.f32 %v2416, %v2422
        %v2425 = vadd.f32 %v2417, %v2422
        %2426 = vst [vmem:[%s391] sm:$0xff] %v2424
        %2427 = vst [vmem:[%s391 + $0x8] sm:$0xff] %v2425
        %s2428 = sand.u32 %s242, 1
        %s2429 = scalar_lea.sflag [#allocation6], %s2428
        %s2430 = sand.u32 %s242, 1
        %s2431 = smul.addr %s2430, 16
        %s2432 = scalar_lea.vmem [#allocation12], %s2431
        // Predicated region
        $region77: #{tpu_custom_call.1} parent=55 // pred_check
          %p2433 = pneg %p252
        $region78: #{tpu_custom_call.1} parent=55 // pred_check_branch
          %2435 = sbr.rel (%p2433) target = $region80
        $region79: #{tpu_custom_call.1} parent=55 // pred_region
          %s2436 = smul.u32 2, %s31
          %s2438 = ssub.s32 256, 256
          %2439 = vsyncadd %s2429, %s2438
          %s2440 = smul.addr %s30, 2
          %s2441 = sadd.s32 %s2436, %s2440
          %s2442 = smul.addr %s2441, 128
          %s2443 = scalar_lea.hbm %s9, %s2442
          %s2444 = sshll.u32 %s2432, 4
          %s2445 = int_to_ptr.vmem [resolvable:$true] %s2444
          %2450 = dma.vmem_to_hbm [thread:$0]  %s2445, 256, %s2443, %s2429, 128, 128, 8
        $region80: #{tpu_custom_call.1} parent=55 // pred_fallthru
          _
      $region56: #{tpu_custom_call.1} parent=5 // pred_fallthru
        _
      %p2451 = scmp.le.s32.totalorder 2, %s21
      // Predicated region
      $region81: #{tpu_custom_call.1} parent=5 // pred_check
        %p2452 = pneg %p2451
      $region82: #{tpu_custom_call.1} parent=5 // pred_check_branch
        %2454 = sbr.rel (%p2452) target = $region84
      $region83: #{tpu_custom_call.1} parent=5 // pred_region
        %s2455 = ssub.s32 %s21, 2
        // Predicated region
        $region85: #{tpu_custom_call.1} parent=83 // pred_check
          %p2456 = pneg %p258
        $region86: #{tpu_custom_call.1} parent=83 // pred_check_branch
          %2458 = sbr.rel (%p2456) target = $region88
        $region87: #{tpu_custom_call.1} parent=83 // pred_region
          %s2459 = sand.u32 %s243, 1
          %s2460 = scalar_lea.sflag [#allocation6], %s2459
          %s2461 = sand.u32 %s243, 1
          %s2462 = smul.addr %s2461, 16
          %s2463 = scalar_lea.vmem [#allocation12], %s2462
          %2464 = dma.done %s2460, 256
        $region88: #{tpu_custom_call.1} parent=83 // pred_fallthru
          _
      $region84: #{tpu_custom_call.1} parent=5 // pred_fallthru
        _
    $region6: #{tpu_custom_call.1} parent=1 // loop_footer
      %s25 = sadd.s32 1, %s21
    $region7: #{tpu_custom_call.1} parent=1 // loop_footer_branch
      %20 = sbr.rel target = $region3
    $region8: #{tpu_custom_call.1} parent=1 // loop_exit
      _
    %2465 = vsyncpa [#allocation5], 1
    %s2466 = scalar_lea.sflag [#allocation5], 1
    %2467 = vsyncpa %s2466, 1
    %2468 = vsyncpa [#allocation8], 1
    %2469 = vsyncpa [#allocation11], 1
    %2470 = vsyncpa [#allocation6], 1
    %s2471 = scalar_lea.sflag [#allocation6], 1
    %2472 = vsyncpa %s2471, 1

</llo_original>
